<compile_context>
chip_gen: v7x
topology: tpu7x:2x2x1
jax: 0.10.0
libtpu: 0.0.40
codegen_flags: <defaults>
</compile_context>

<pallas_src>
import functools

import jax
import jax.numpy as jnp
from jax.experimental import pallas as pl
from jax.experimental.pallas import tpu as pltpu

EPS = 1e-6          # LayerNorm2d eps in NAFNet
_BF16_MIN_K = 32    # cast MXU operands to bf16 once the contraction dim >= this


# ----------------------------------------------------------------------------
# Small helpers
# ----------------------------------------------------------------------------
def _vmem_limit_bytes():
    """Per-generation VMEM budget (physical capacity * 3/4, conservative fallback)."""
    cap = 64 << 20
    try:
        info = pltpu.get_tpu_info()
        cap = int(getattr(info, "vmem_capacity_bytes", cap))
    except Exception:
        pass
    return int(cap * 3 // 4)


def _maybe_bf16(x, k):
    """Cast an MXU operand to bf16 at real widths (f32 accumulation elsewhere)."""
    return x.astype(jnp.bfloat16) if k >= _BF16_MIN_K else x


# ----------------------------------------------------------------------------
# In-kernel helpers (channels-first: activations are (C, S) with S = pixels)
# ----------------------------------------------------------------------------
def _ln_cs(x, w, b):
    """LayerNorm2d on a (C, S) tile: normalize over the channel (sublane) axis."""
    mu = jnp.mean(x, axis=0, keepdims=True)
    xc = x - mu
    var = jnp.mean(xc * xc, axis=0, keepdims=True)
    return xc * jax.lax.rsqrt(var + EPS) * w + b          # rsqrt -> EUP slot


def _conv1x1(w, x, b):
    """1x1 conv in channels-first layout: (Co,Ci) x (Ci,S) + (Co,1) bias.

    Ci <= 8 or S == 1 (the SCA pointwise) -> VPU broadcast-FMA; otherwise the
    MXU, with bf16 operands once Ci >= 32 (f32 accumulation).
    """
    ci = w.shape[1]
    s = x.shape[1]
    if ci <= 8 or s == 1:
        acc = x[0:1, :] * w[:, 0:1]
        for i in range(1, ci):
            acc = acc + x[i:i + 1, :] * w[:, i:i + 1]
        return acc + b
    return jnp.dot(_maybe_bf16(w, ci), _maybe_bf16(x, ci),
                   preferred_element_type=jnp.float32) + b


def _dwconv3x3_flat(t, wk, bk, H, W):
    """Depthwise 3x3 conv, padding=1, on t laid out (C2, H*W) row-major (h, w).

    Lane rotations (pltpu.roll -> XLU) + edge masks; masks / iotas are hoisted
    out of the 8-tap loop (no re-emitted compares / broadcasts per tap).
    wk: (C2, 9) per-channel taps (row-major 3x3), bk: (C2, 1).
    """
    S = H * W
    pos = jax.lax.broadcasted_iota(jnp.int32, (1, S), 1)
    col = pos % W
    row_masks = {-1: pos >= W, 0: None, 1: pos < (H - 1) * W}
    col_masks = {-1: col > 0, 0: None, 1: col < W - 1}

    acc = t * wk[:, 4:5] + bk                              # centre tap (1,1)
    for dy in (-1, 0, 1):
        for dx in (-1, 0, 1):
            if dy == 0 and dx == 0:
                continue
            d = dy * W + dx                                # source = t[h+dy, w+dx]
            shifted = pltpu.roll(t, shift=(-d) % S, axis=1)
            rm, cm = row_masks[dy], col_masks[dx]
            if rm is None:
                mask = cm
            elif cm is None:
                mask = rm
            else:
                mask = jnp.logical_and(rm, cm)
            k = (dy + 1) * 3 + (dx + 1)
            acc = acc + jnp.where(mask, shifted, 0.0) * wk[:, k:k + 1]
    return acc


# ----------------------------------------------------------------------------
# NAFBlock kernel: both views of one image per grid step, block = (1, C, H*W)
# ----------------------------------------------------------------------------
def _naf_body(x, vc, v2c, wdw, w1, wsca, w3, w4, w5, H, W):
    C = x.shape[0]
    n1w, n1b = vc[:, 0:1], vc[:, 1:2]
    bsca, b3 = vc[:, 2:3], vc[:, 3:4]
    n2w, n2b = vc[:, 4:5], vc[:, 5:6]
    b5, beta, gamma = vc[:, 6:7], vc[:, 7:8], vc[:, 8:9]
    b1, bdw, b4 = v2c[:, 0:1], v2c[:, 1:2], v2c[:, 2:3]

    # --- branch 1: norm1 -> conv1(1x1) -> dwconv3x3 -> SimpleGate -> SCA -> conv3 ---
    t = _ln_cs(x, n1w, n1b)
    t = _conv1x1(w1, t, b1)                                # (2C, S)
    t = _dwconv3x3_flat(t, wdw, bdw, H, W)
    t = t[:C] * t[C:]                                      # SimpleGate -> (C, S)
    s = jnp.mean(t, axis=1, keepdims=True)                 # global avg pool (C, 1)
    t = t * _conv1x1(wsca, s, bsca)                        # SCA channel scaling
    t = _conv1x1(w3, t, b3)
    # dropout1 is identity (drop_out_rate = 0.0)
    y = x + t * beta

    # --- branch 2: norm2 -> conv4(1x1) -> SimpleGate -> conv5(1x1) ---
    t = _ln_cs(y, n2w, n2b)
    t = _conv1x1(w4, t, b4)                                # (2C, S)
    t = t[:C] * t[C:]
    t = _conv1x1(w5, t, b5)
    # dropout2 is identity (drop_out_rate = 0.0)
    return y + t * gamma


def nafblock_kernel(xl_ref, xr_ref, vc_ref, v2c_ref, wdw_ref, w1_ref, wsca_ref,
                    w3_ref, w4_ref, w5_ref, ol_ref, or_ref, *, H, W):
    vc = vc_ref[...].astype(jnp.float32)
    v2c = v2c_ref[...].astype(jnp.float32)
    wdw = wdw_ref[...].astype(jnp.float32)
    w1, wsca = w1_ref[...], wsca_ref[...]
    w3, w4, w5 = w3_ref[...], w4_ref[...], w5_ref[...]

    ol_ref[0] = _naf_body(xl_ref[0].astype(jnp.float32), vc, v2c,
                          wdw, w1, wsca, w3, w4, w5, H, W).astype(ol_ref.dtype)
    or_ref[0] = _naf_body(xr_ref[0].astype(jnp.float32), vc, v2c,
                          wdw, w1, wsca, w3, w4, w5, H, W).astype(or_ref.dtype)


# ----------------------------------------------------------------------------
# SCAM kernel: grid = (batch, row-strips); attention is per image row.
# Pixels-major inside: one transpose per view in, one per fused output out.
# ----------------------------------------------------------------------------
def _ln_sc(x, w_row, b_row):
    """LayerNorm2d on a pixels-major (S, C) tile: normalize over the lane axis."""
    mu = jnp.mean(x, axis=1, keepdims=True)
    xc = x - mu
    var = jnp.mean(xc * xc, axis=1, keepdims=True)
    return xc * jax.lax.rsqrt(var + EPS) * w_row + b_row


def _proj_sc(x_p, wT, b_row):
    """1x1 conv in pixels-major layout: (S,Ci) @ (Ci,Co) + (1,Co)."""
    k = wT.shape[0]
    return jnp.dot(_maybe_bf16(x_p, k), _maybe_bf16(wT, k),
                   preferred_element_type=jnp.float32) + b_row


def scam_kernel(xl_ref, xr_ref, vec_ref, wT_ref, ol_ref, or_ref,
                *, th, w_img, scale):
    C = xl_ref.shape[1]
    S = xl_ref.shape[2]                                    # = th * w_img
    vec = vec_ref[...].astype(jnp.float32)                 # (10, C) rows
    wT = wT_ref[...].astype(jnp.float32)                   # (4C, C), pre-transposed
    nlw, nlb = vec[0:1], vec[1:2]
    nrw, nrb = vec[2:3], vec[3:4]
    bl1, br1 = vec[4:5], vec[5:6]
    bl2, br2 = vec[6:7], vec[7:8]
    beta, gamma = vec[8:9], vec[9:10]
    wl1T, wr1T = wT[0:C], wT[C:2 * C]
    wl2T, wr2T = wT[2 * C:3 * C], wT[3 * C:4 * C]

    # One transpose per view into pixels-major (S, C); everything stays there.
    xl = jnp.transpose(xl_ref[0].astype(jnp.float32), (1, 0))
    xr = jnp.transpose(xr_ref[0].astype(jnp.float32), (1, 0))

    ql = _proj_sc(_ln_sc(xl, nlw, nlb), wl1T, bl1)
    qr = _proj_sc(_ln_sc(xr, nrw, nrb), wr1T, br1)
    vl = _proj_sc(xl, wl2T, bl2)
    vr = _proj_sc(xr, wr2T, br2)

    def rows(a):                                           # (S, C) -> (rows, W, C)
        return a.reshape(th, w_img, C)

    ql_r, qr_r, vl_r, vr_r = rows(ql), rows(qr), rows(vl), rows(vr)

    def cross(q_a, q_b, v_b):
        # attn[h,i,j] = <q_a[h,i], q_b[h,j]> * scale; out[h,i] = softmax_j(attn) @ v_b
        attn = jnp.einsum("hwc,hvc->hwv",
                          _maybe_bf16(q_a, C), _maybe_bf16(q_b, C),
                          preferred_element_type=jnp.float32) * scale
        a = jax.nn.softmax(attn, axis=-1)                  # softmax stays in f32
        return jnp.einsum("hwv,hvc->hwc",
                          _maybe_bf16(a, w_img), _maybe_bf16(v_b, w_img),
                          preferred_element_type=jnp.float32)

    # Both directions via the same einsum pattern (swapped Q operands is
    # mathematically the softmax over axis -2 of the transposed logits).
    # TODO(synk): at real C/W compute the logits once and reuse them via an XLU
    # transpose for the reverse direction to halve the QK^T MXU work.
    f_r2l = cross(ql_r, qr_r, vr_r).reshape(S, C)          # added to the left view
    f_l2r = cross(qr_r, ql_r, vl_r).reshape(S, C)          # added to the right view

    ol_ref[0] = jnp.transpose(xl + f_r2l * beta, (1, 0)).astype(ol_ref.dtype)
    or_ref[0] = jnp.transpose(xr + f_l2r * gamma, (1, 0)).astype(or_ref.dtype)


# ----------------------------------------------------------------------------
# pallas_call wrappers
# ----------------------------------------------------------------------------
def _const_spec(shape, grid_ndim):
    zeros = (0,) * len(shape)
    if grid_ndim == 1:
        return pl.BlockSpec(shape, lambda b: zeros)
    return pl.BlockSpec(shape, lambda b, h: zeros)


def nafblock_pallas(x_l, x_r, p, H, W, out_dtype=jnp.float32):
    """x_l, x_r: (B, C, H*W) channels-first, flattened spatial (lane-dense)."""
    B, C, S = x_l.shape
    # Pack the 12 tiny bias / norm / scale params into two arrays (fewer DMAs,
    # no per-constant double-buffering).
    vecC = jnp.concatenate(
        [p[k] for k in ("n1w", "n1b", "bsca", "b3", "n2w", "n2b", "b5",
                        "beta", "gamma")], axis=1)                   # (C, 9)
    vec2C = jnp.concatenate([p["b1"], p["bdw"], p["b4"]], axis=1)     # (2C, 3)
    weights = [p["wdw"], p["w1"], p["wsca"], p["w3"], p["w4"], p["w5"]]

    io_spec = pl.BlockSpec((1, C, S), lambda b: (b, 0, 0))
    consts = [vecC, vec2C] + weights
    in_specs = [io_spec, io_spec] + [_const_spec(q.shape, 1) for q in consts]

    out_shape = (jax.ShapeDtypeStruct((B, C, S), out_dtype),
                 jax.ShapeDtypeStruct((B, C, S), out_dtype))
    return pl.pallas_call(
        functools.partial(nafblock_kernel, H=H, W=W),
        out_shape=out_shape,
        grid_spec=pltpu.PrefetchScalarGridSpec(
            num_scalar_prefetch=0,
            grid=(B,),
            in_specs=in_specs,
            out_specs=[io_spec, io_spec],
        ),
        compiler_params=pltpu.CompilerParams(
            dimension_semantics=("parallel",),
            vmem_limit_bytes=_vmem_limit_bytes()),
    )(x_l, x_r, *consts)


def _scam_strip_bytes(th, W, C):
    """Rough f32 VMEM footprint of one SCAM row strip (activations + dbl-buffered I/O)."""
    S = th * W
    act = (2 + 4 + 2) * C * S + 2 * th * W * W   # xl/xr, 4 projections, 2 attn maps
    dbuf = 2 * (2 + 2) * C * S                   # double-buffered 2 in + 2 out blocks
    return 4 * (act + dbuf)


def _pick_row_tile(H, W, C, vmem_budget, lane_target=8192):
    """Largest row-strip th (H % th == 0, th*W lane-legal) that fits the VMEM budget."""
    legal = [th for th in range(1, H + 1)
             if H % th == 0 and ((th * W) % 128 == 0 or th == H)]
    fit = [th for th in legal if _scam_strip_bytes(th, W, C) <= vmem_budget]
    cands = fit if fit else legal[:1]
    in_range = [th for th in cands if th * W <= lane_target]
    return max(in_range) if in_range else min(cands)


def scam_pallas(xl, xr, p, H, W):
    B, C, S = xl.shape
    vmem_limit = _vmem_limit_bytes()
    th = _pick_row_tile(H, W, C, vmem_limit // 2)
    scale = C ** (-0.5)

    # Pack the 10 tiny params as (10, C) rows (pixels-major friendly) and the
    # four 1x1 weights pre-transposed as one (4C, C) slab.
    vec = jnp.concatenate(
        [p[k].reshape(1, C) for k in ("nlw", "nlb", "nrw", "nrb",
                                      "bl1", "br1", "bl2", "br2",
                                      "beta", "gamma")], axis=0)      # (10, C)
    wT = jnp.concatenate([p["wl1"].T, p["wr1"].T,
                          p["wl2"].T, p["wr2"].T], axis=0)            # (4C, C)

    io_spec = pl.BlockSpec((1, C, th * W), lambda b, h: (b, 0, h))
    in_specs = [io_spec, io_spec,
                _const_spec(vec.shape, 2), _const_spec(wT.shape, 2)]

    return pl.pallas_call(
        functools.partial(scam_kernel, th=th, w_img=W, scale=scale),
        out_shape=(jax.ShapeDtypeStruct((B, C, S), jnp.float32),
                   jax.ShapeDtypeStruct((B, C, S), jnp.float32)),
        grid_spec=pltpu.PrefetchScalarGridSpec(
            num_scalar_prefetch=0,
            grid=(B, H // th),
            in_specs=in_specs,
            out_specs=[io_spec, io_spec],
        ),
        compiler_params=pltpu.CompilerParams(
            dimension_semantics=("parallel", "parallel"),
            vmem_limit_bytes=vmem_limit),
    )(xl, xr, vec, wT)


def nafblock_sr_forward(x_l, x_r, naf_p, scam_p, inter_dtype=jnp.float32):
    """NAFBlockSR.forward (fusion=True) on two NCHW feature maps.

    inter_dtype: dtype of the NAFBlock->SCAM intermediate (use jnp.bfloat16 at
    real widths to halve inter-kernel HBM traffic; f32 here for a tight check).
    """
    B, C, H, W = x_l.shape
    xl = x_l.reshape(B, C, H * W)      # free relayout (no data movement)
    xr = x_r.reshape(B, C, H * W)
    y_l, y_r = nafblock_pallas(xl, xr, naf_p, H, W, out_dtype=inter_dtype)
    z_l, z_r = scam_pallas(y_l, y_r, scam_p, H, W)
    return z_l.reshape(B, C, H, W), z_r.reshape(B, C, H, W)


# ----------------------------------------------------------------------------
# Pure-JAX reference (NCHW, matching the PyTorch module) for verification
# ----------------------------------------------------------------------------
def _ln_ref(x, w, b):
    mu = jnp.mean(x, axis=1, keepdims=True)
    var = jnp.mean((x - mu) ** 2, axis=1, keepdims=True)
    return ((x - mu) / jnp.sqrt(var + EPS)) * w.reshape(1, -1, 1, 1) + b.reshape(1, -1, 1, 1)


def _conv1x1_ref(x, w, b):
    return jnp.einsum("oc,bchw->bohw", w, x, precision="highest") + b.reshape(1, -1, 1, 1)


def _dwconv3x3_ref(x, wdw, bdw):
    H, W = x.shape[2], x.shape[3]
    xp = jnp.pad(x, ((0, 0), (0, 0), (1, 1), (1, 1)))
    out = jnp.zeros_like(x)
    for dy in range(3):
        for dx in range(3):
            out = out + xp[:, :, dy:dy + H, dx:dx + W] * wdw[:, dy * 3 + dx].reshape(1, -1, 1, 1)
    return out + bdw.reshape(1, -1, 1, 1)


def nafblock_ref(x, p):
    C = x.shape[1]
    t = _ln_ref(x, p["n1w"], p["n1b"])
    t = _conv1x1_ref(t, p["w1"], p["b1"])
    t = _dwconv3x3_ref(t, p["wdw"], p["bdw"])
    t = t[:, :C] * t[:, C:]
    s = t.mean(axis=(2, 3), keepdims=True)
    s = jnp.einsum("oc,bcij->boij", p["wsca"], s, precision="highest") + p["bsca"].reshape(1, -1, 1, 1)
    t = t * s
    t = _conv1x1_ref(t, p["w3"], p["b3"])
    y = x + t * p["beta"].reshape(1, -1, 1, 1)
    t = _ln_ref(y, p["n2w"], p["n2b"])
    t = _conv1x1_ref(t, p["w4"], p["b4"])
    t = t[:, :C] * t[:, C:]
    t = _conv1x1_ref(t, p["w5"], p["b5"])
    return y + t * p["gamma"].reshape(1, -1, 1, 1)


def scam_ref(xl, xr, p):
    C = xl.shape[1]
    scale = C ** (-0.5)
    ql = _conv1x1_ref(_ln_ref(xl, p["nlw"], p["nlb"]), p["wl1"], p["bl1"])
    qr = _conv1x1_ref(_ln_ref(xr, p["nrw"], p["nrb"]), p["wr1"], p["br1"])
    vl = _conv1x1_ref(xl, p["wl2"], p["bl2"])
    vr = _conv1x1_ref(xr, p["wr2"], p["br2"])
    qlp, qrp = jnp.transpose(ql, (0, 2, 3, 1)), jnp.transpose(qr, (0, 2, 3, 1))
    vlp, vrp = jnp.transpose(vl, (0, 2, 3, 1)), jnp.transpose(vr, (0, 2, 3, 1))
    attn = jnp.einsum("bhwc,bhvc->bhwv", qlp, qrp, precision="highest") * scale
    f_r2l = jnp.einsum("bhwv,bhvc->bhwc", jax.nn.softmax(attn, -1), vrp, precision="highest")
    f_l2r = jnp.einsum("bhwv,bhwc->bhvc", jax.nn.softmax(attn, -2), vlp, precision="highest")
    f_r2l = jnp.transpose(f_r2l, (0, 3, 1, 2))
    f_l2r = jnp.transpose(f_l2r, (0, 3, 1, 2))
    return (xl + f_r2l * p["beta"].reshape(1, -1, 1, 1),
            xr + f_l2r * p["gamma"].reshape(1, -1, 1, 1))


def nafblock_sr_ref(x_l, x_r, naf_p, scam_p):
    return scam_ref(nafblock_ref(x_l, naf_p), nafblock_ref(x_r, naf_p), scam_p)


# ----------------------------------------------------------------------------
# Deterministic parameter init (channels-first weight layout; beta/gamma get
# small random values instead of torch's zeros so the fusion paths are
# exercised — synthetic kernel test, not a checkpoint load).
# ----------------------------------------------------------------------------
def init_nafblock_params(key, c):
    ks = jax.random.split(key, 18)
    n = lambda k, shp, sc=0.2: jax.random.normal(k, shp, jnp.float32) * sc
    return {
        "n1w": 1.0 + n(ks[0], (c, 1), 0.05),  "n1b": n(ks[1], (c, 1), 0.05),
        "w1": n(ks[2], (2 * c, c)),           "b1": n(ks[3], (2 * c, 1), 0.05),
        "wdw": n(ks[4], (2 * c, 9)),          "bdw": n(ks[5], (2 * c, 1), 0.05),
        "wsca": n(ks[6], (c, c)),             "bsca": n(ks[7], (c, 1), 0.05),
        "w3": n(ks[8], (c, c)),               "b3": n(ks[9], (c, 1), 0.05),
        "n2w": 1.0 + n(ks[10], (c, 1), 0.05), "n2b": n(ks[11], (c, 1), 0.05),
        "w4": n(ks[12], (2 * c, c)),          "b4": n(ks[13], (2 * c, 1), 0.05),
        "w5": n(ks[14], (c, c)),              "b5": n(ks[15], (c, 1), 0.05),
        "beta": n(ks[16], (c, 1), 0.5),       "gamma": n(ks[17], (c, 1), 0.5),
    }


def init_scam_params(key, c):
    ks = jax.random.split(key, 14)
    n = lambda k, shp, sc=0.2: jax.random.normal(k, shp, jnp.float32) * sc
    return {
        "nlw": 1.0 + n(ks[0], (c, 1), 0.05), "nlb": n(ks[1], (c, 1), 0.05),
        "nrw": 1.0 + n(ks[2], (c, 1), 0.05), "nrb": n(ks[3], (c, 1), 0.05),
        "wl1": n(ks[4], (c, c)),             "bl1": n(ks[5], (c, 1), 0.05),
        "wr1": n(ks[6], (c, c)),             "br1": n(ks[7], (c, 1), 0.05),
        "wl2": n(ks[8], (c, c)),             "bl2": n(ks[9], (c, 1), 0.05),
        "wr2": n(ks[10], (c, c)),            "br2": n(ks[11], (c, 1), 0.05),
        "beta": n(ks[12], (c, 1), 0.5),      "gamma": n(ks[13], (c, 1), 0.5),
    }


if __name__ == "__main__":
    B, C, H, W = 2, 4, 16, 16
    key = jax.random.PRNGKey(0)
    k_xl, k_xr, k_naf, k_scam = jax.random.split(key, 4)

    # PyTorch-convention NCHW inputs
    x_l = jax.random.normal(k_xl, (B, C, H, W), jnp.float32)
    x_r = jax.random.normal(k_xr, (B, C, H, W), jnp.float32)

    naf_p = init_nafblock_params(k_naf, C)
    scam_p = init_scam_params(k_scam, C)

    y_l, y_r = nafblock_sr_forward(x_l, x_r, naf_p, scam_p)
    jax.block_until_ready((y_l, y_r))

    r_l, r_r = nafblock_sr_ref(x_l, x_r, naf_p, scam_p)
    assert y_l.shape == (B, C, H, W) and y_r.shape == (B, C, H, W)
    err_l = float(jnp.abs(y_l - r_l).max())
    err_r = float(jnp.abs(y_r - r_r).max())
    assert jnp.allclose(y_l, r_l, rtol=2e-3, atol=2e-3), err_l
    assert jnp.allclose(y_r, r_r, rtol=2e-3, atol=2e-3), err_r

    print("KERNEL_OK")
</pallas_src>

<mosaic_0001>
module attributes {stable_mosaic.version = 11 : i64} {
  func.func @nafblock_kernel(%arg0: i32, %arg1: memref<1x4x256xf32, #tpu.memory_space<vmem>>, %arg2: memref<1x4x256xf32, #tpu.memory_space<vmem>>, %arg3: memref<4x9xf32, #tpu.memory_space<vmem>>, %arg4: memref<8x3xf32, #tpu.memory_space<vmem>>, %arg5: memref<8x9xf32, #tpu.memory_space<vmem>>, %arg6: memref<8x4xf32, #tpu.memory_space<vmem>>, %arg7: memref<4x4xf32, #tpu.memory_space<vmem>>, %arg8: memref<4x4xf32, #tpu.memory_space<vmem>>, %arg9: memref<8x4xf32, #tpu.memory_space<vmem>>, %arg10: memref<4x4xf32, #tpu.memory_space<vmem>>, %arg11: memref<1x4x256xf32, #tpu.memory_space<vmem>>, %arg12: memref<1x4x256xf32, #tpu.memory_space<vmem>>) attributes {dimension_semantics = [#tpu.dimension_semantics<parallel>], iteration_bounds = array<i64: 2>, scalar_prefetch = 0 : i64, scratch_operands = 0 : i64, tpu.core_type = #tpu.core_type<tc>, window_params = [{transform_indices = @transform_0, window_bounds = array<i64: 1, 4, 256>}, {transform_indices = @transform_1, window_bounds = array<i64: 1, 4, 256>}, {pipeline_mode = #tpu.pipeline_mode<synchronous>, transform_indices = @transform_2, window_bounds = array<i64: 4, 9>}, {pipeline_mode = #tpu.pipeline_mode<synchronous>, transform_indices = @transform_3, window_bounds = array<i64: 8, 3>}, {pipeline_mode = #tpu.pipeline_mode<synchronous>, transform_indices = @transform_4, window_bounds = array<i64: 8, 9>}, {pipeline_mode = #tpu.pipeline_mode<synchronous>, transform_indices = @transform_5, window_bounds = array<i64: 8, 4>}, {pipeline_mode = #tpu.pipeline_mode<synchronous>, transform_indices = @transform_6, window_bounds = array<i64: 4, 4>}, {pipeline_mode = #tpu.pipeline_mode<synchronous>, transform_indices = @transform_7, window_bounds = array<i64: 4, 4>}, {pipeline_mode = #tpu.pipeline_mode<synchronous>, transform_indices = @transform_8, window_bounds = array<i64: 8, 4>}, {pipeline_mode = #tpu.pipeline_mode<synchronous>, transform_indices = @transform_9, window_bounds = array<i64: 4, 4>}, {transform_indices = @transform_10, window_bounds = array<i64: 1, 4, 256>}, {transform_indices = @transform_11, window_bounds = array<i64: 1, 4, 256>}]} {
    %c0 = arith.constant 0 : index
    %c0_0 = arith.constant 0 : index
    %0 = vector.load %arg3[%c0, %c0_0] : memref<4x9xf32, #tpu.memory_space<vmem>>, vector<4x9xf32>
    %c0_1 = arith.constant 0 : index
    %c0_2 = arith.constant 0 : index
    %1 = vector.load %arg4[%c0_1, %c0_2] : memref<8x3xf32, #tpu.memory_space<vmem>>, vector<8x3xf32>
    %c0_3 = arith.constant 0 : index
    %c0_4 = arith.constant 0 : index
    %2 = vector.load %arg5[%c0_3, %c0_4] : memref<8x9xf32, #tpu.memory_space<vmem>>, vector<8x9xf32>
    %c0_5 = arith.constant 0 : index
    %c0_6 = arith.constant 0 : index
    %3 = vector.load %arg6[%c0_5, %c0_6] : memref<8x4xf32, #tpu.memory_space<vmem>>, vector<8x4xf32>
    %c0_7 = arith.constant 0 : index
    %c0_8 = arith.constant 0 : index
    %4 = vector.load %arg7[%c0_7, %c0_8] : memref<4x4xf32, #tpu.memory_space<vmem>>, vector<4x4xf32>
    %c0_9 = arith.constant 0 : index
    %c0_10 = arith.constant 0 : index
    %5 = vector.load %arg8[%c0_9, %c0_10] : memref<4x4xf32, #tpu.memory_space<vmem>>, vector<4x4xf32>
    %c0_11 = arith.constant 0 : index
    %c0_12 = arith.constant 0 : index
    %6 = vector.load %arg9[%c0_11, %c0_12] : memref<8x4xf32, #tpu.memory_space<vmem>>, vector<8x4xf32>
    %c0_13 = arith.constant 0 : index
    %c0_14 = arith.constant 0 : index
    %7 = vector.load %arg10[%c0_13, %c0_14] : memref<4x4xf32, #tpu.memory_space<vmem>>, vector<4x4xf32>
    %c0_15 = arith.constant 0 : index
    %c0_16 = arith.constant 0 : index
    %c0_17 = arith.constant 0 : index
    %8 = vector.load %arg1[%c0_15, %c0_16, %c0_17] : memref<1x4x256xf32, #tpu.memory_space<vmem>>, vector<1x4x256xf32>
    %9 = vector.shape_cast %8 : vector<1x4x256xf32> to vector<4x256xf32>
    %10 = vector.extract_strided_slice %0 {offsets = [0, 0], sizes = [4, 1], strides = [1, 1]} : vector<4x9xf32> to vector<4x1xf32>
    %11 = vector.extract_strided_slice %0 {offsets = [0, 1], sizes = [4, 1], strides = [1, 1]} : vector<4x9xf32> to vector<4x1xf32>
    %12 = vector.extract_strided_slice %0 {offsets = [0, 2], sizes = [4, 1], strides = [1, 1]} : vector<4x9xf32> to vector<4x1xf32>
    %13 = vector.extract_strided_slice %0 {offsets = [0, 3], sizes = [4, 1], strides = [1, 1]} : vector<4x9xf32> to vector<4x1xf32>
    %14 = vector.extract_strided_slice %0 {offsets = [0, 4], sizes = [4, 1], strides = [1, 1]} : vector<4x9xf32> to vector<4x1xf32>
    %15 = vector.extract_strided_slice %0 {offsets = [0, 5], sizes = [4, 1], strides = [1, 1]} : vector<4x9xf32> to vector<4x1xf32>
    %16 = vector.extract_strided_slice %0 {offsets = [0, 6], sizes = [4, 1], strides = [1, 1]} : vector<4x9xf32> to vector<4x1xf32>
    %17 = vector.extract_strided_slice %0 {offsets = [0, 7], sizes = [4, 1], strides = [1, 1]} : vector<4x9xf32> to vector<4x1xf32>
    %18 = vector.extract_strided_slice %0 {offsets = [0, 8], sizes = [4, 1], strides = [1, 1]} : vector<4x9xf32> to vector<4x1xf32>
    %19 = vector.extract_strided_slice %1 {offsets = [0, 0], sizes = [8, 1], strides = [1, 1]} : vector<8x3xf32> to vector<8x1xf32>
    %20 = vector.extract_strided_slice %1 {offsets = [0, 1], sizes = [8, 1], strides = [1, 1]} : vector<8x3xf32> to vector<8x1xf32>
    %21 = vector.extract_strided_slice %1 {offsets = [0, 2], sizes = [8, 1], strides = [1, 1]} : vector<8x3xf32> to vector<8x1xf32>
    %cst = arith.constant dense<0.000000e+00> : vector<256xf32>
    %22 = vector.multi_reduction <add>, %9, %cst [0] : vector<4x256xf32> to vector<256xf32>
    %23 = vector.shape_cast %22 : vector<256xf32> to vector<1x256xf32>
    %cst_18 = arith.constant 4.000000e+00 : f32
    %24 = vector.broadcast %cst_18 : f32 to vector<1x256xf32>
    %25 = arith.divf %23, %24 : vector<1x256xf32>
    %26 = vector.broadcast %25 : vector<1x256xf32> to vector<4x256xf32>
    %27 = arith.subf %9, %26 : vector<4x256xf32>
    %28 = arith.mulf %27, %27 : vector<4x256xf32>
    %cst_19 = arith.constant dense<0.000000e+00> : vector<256xf32>
    %29 = vector.multi_reduction <add>, %28, %cst_19 [0] : vector<4x256xf32> to vector<256xf32>
    %30 = vector.shape_cast %29 : vector<256xf32> to vector<1x256xf32>
    %cst_20 = arith.constant 4.000000e+00 : f32
    %31 = vector.broadcast %cst_20 : f32 to vector<1x256xf32>
    %32 = arith.divf %30, %31 : vector<1x256xf32>
    %cst_21 = arith.constant 9.99999997E-7 : f32
    %33 = vector.broadcast %cst_21 : f32 to vector<1x256xf32>
    %34 = arith.addf %32, %33 : vector<1x256xf32>
    %35 = math.rsqrt %34 : vector<1x256xf32>
    %36 = vector.broadcast %35 : vector<1x256xf32> to vector<4x256xf32>
    %37 = arith.mulf %27, %36 : vector<4x256xf32>
    %38 = vector.broadcast %10 : vector<4x1xf32> to vector<4x256xf32>
    %39 = arith.mulf %37, %38 : vector<4x256xf32>
    %40 = vector.broadcast %11 : vector<4x1xf32> to vector<4x256xf32>
    %41 = arith.addf %39, %40 : vector<4x256xf32>
    %42 = vector.extract_strided_slice %41 {offsets = [0, 0], sizes = [1, 256], strides = [1, 1]} : vector<4x256xf32> to vector<1x256xf32>
    %43 = vector.extract_strided_slice %3 {offsets = [0, 0], sizes = [8, 1], strides = [1, 1]} : vector<8x4xf32> to vector<8x1xf32>
    %44 = vector.broadcast %42 : vector<1x256xf32> to vector<8x256xf32>
    %45 = vector.broadcast %43 : vector<8x1xf32> to vector<8x256xf32>
    %46 = arith.mulf %44, %45 : vector<8x256xf32>
    %47 = vector.extract_strided_slice %41 {offsets = [1, 0], sizes = [1, 256], strides = [1, 1]} : vector<4x256xf32> to vector<1x256xf32>
    %48 = vector.extract_strided_slice %3 {offsets = [0, 1], sizes = [8, 1], strides = [1, 1]} : vector<8x4xf32> to vector<8x1xf32>
    %49 = vector.broadcast %47 : vector<1x256xf32> to vector<8x256xf32>
    %50 = vector.broadcast %48 : vector<8x1xf32> to vector<8x256xf32>
    %51 = arith.mulf %49, %50 : vector<8x256xf32>
    %52 = arith.addf %46, %51 : vector<8x256xf32>
    %53 = vector.extract_strided_slice %41 {offsets = [2, 0], sizes = [1, 256], strides = [1, 1]} : vector<4x256xf32> to vector<1x256xf32>
    %54 = vector.extract_strided_slice %3 {offsets = [0, 2], sizes = [8, 1], strides = [1, 1]} : vector<8x4xf32> to vector<8x1xf32>
    %55 = vector.broadcast %53 : vector<1x256xf32> to vector<8x256xf32>
    %56 = vector.broadcast %54 : vector<8x1xf32> to vector<8x256xf32>
    %57 = arith.mulf %55, %56 : vector<8x256xf32>
    %58 = arith.addf %52, %57 : vector<8x256xf32>
    %59 = vector.extract_strided_slice %41 {offsets = [3, 0], sizes = [1, 256], strides = [1, 1]} : vector<4x256xf32> to vector<1x256xf32>
    %60 = vector.extract_strided_slice %3 {offsets = [0, 3], sizes = [8, 1], strides = [1, 1]} : vector<8x4xf32> to vector<8x1xf32>
    %61 = vector.broadcast %59 : vector<1x256xf32> to vector<8x256xf32>
    %62 = vector.broadcast %60 : vector<8x1xf32> to vector<8x256xf32>
    %63 = arith.mulf %61, %62 : vector<8x256xf32>
    %64 = arith.addf %58, %63 : vector<8x256xf32>
    %65 = vector.broadcast %19 : vector<8x1xf32> to vector<8x256xf32>
    %66 = arith.addf %64, %65 : vector<8x256xf32>
    %67 = tpu.iota {dimensions = array<i32: 1>} : vector<1x256xi32>
    %c16_i32 = arith.constant 16 : i32
    %c0_i32 = arith.constant 0 : i32
    %68 = arith.cmpi eq, %c16_i32, %c0_i32 : i32
    %c1_i32 = arith.constant 1 : i32
    %69 = arith.select %68, %c1_i32, %c16_i32 : i32
    %70 = vector.broadcast %69 : i32 to vector<1x256xi32>
    %71 = arith.remsi %67, %70 : vector<1x256xi32>
    %c0_i32_22 = arith.constant 0 : i32
    %72 = vector.broadcast %c0_i32_22 : i32 to vector<1x256xi32>
    %73 = arith.cmpi ne, %71, %72 : vector<1x256xi32>
    %c0_i32_23 = arith.constant 0 : i32
    %74 = vector.broadcast %c0_i32_23 : i32 to vector<1x256xi32>
    %75 = arith.cmpi slt, %71, %74 : vector<1x256xi32>
    %c0_i32_24 = arith.constant 0 : i32
    %76 = arith.cmpi slt, %69, %c0_i32_24 : i32
    %77 = vector.broadcast %76 : i1 to vector<1x256xi1>
    %78 = vector.broadcast %77 : vector<1x256xi1> to vector<1x256xi1>
    %79 = arith.xori %75, %78 : vector<1x256xi1>
    %80 = arith.andi %79, %73 : vector<1x256xi1>
    %81 = vector.broadcast %69 : i32 to vector<1x256xi32>
    %82 = arith.addi %71, %81 : vector<1x256xi32>
    %83 = arith.select %80, %82, %71 : vector<1x256xi1>, vector<1x256xi32>
    %c16_i32_25 = arith.constant 16 : i32
    %84 = vector.broadcast %c16_i32_25 : i32 to vector<1x256xi32>
    %85 = arith.cmpi sge, %67, %84 : vector<1x256xi32>
    %c240_i32 = arith.constant 240 : i32
    %86 = vector.broadcast %c240_i32 : i32 to vector<1x256xi32>
    %87 = arith.cmpi slt, %67, %86 : vector<1x256xi32>
    %c0_i32_26 = arith.constant 0 : i32
    %88 = vector.broadcast %c0_i32_26 : i32 to vector<1x256xi32>
    %89 = arith.cmpi sgt, %83, %88 : vector<1x256xi32>
    %c15_i32 = arith.constant 15 : i32
    %90 = vector.broadcast %c15_i32 : i32 to vector<1x256xi32>
    %91 = arith.cmpi slt, %83, %90 : vector<1x256xi32>
    %92 = vector.extract_strided_slice %2 {offsets = [0, 4], sizes = [8, 1], strides = [1, 1]} : vector<8x9xf32> to vector<8x1xf32>
    %93 = vector.broadcast %92 : vector<8x1xf32> to vector<8x256xf32>
    %94 = arith.mulf %66, %93 : vector<8x256xf32>
    %95 = vector.broadcast %20 : vector<8x1xf32> to vector<8x256xf32>
    %96 = arith.addf %94, %95 : vector<8x256xf32>
    %c17_i32 = arith.constant 17 : i32
    %97 = tpu.dynamic_rotate %66 by %c17_i32 dim 1 : vector<8x256xf32>, i32 -> vector<8x256xf32>
    %98 = arith.andi %85, %89 : vector<1x256xi1>
    %cst_27 = arith.constant 0.000000e+00 : f32
    %99 = vector.shape_cast %98 : vector<1x256xi1> to vector<1x256xi1>
    %100 = vector.broadcast %99 : vector<1x256xi1> to vector<8x256xi1>
    %101 = vector.broadcast %cst_27 : f32 to vector<8x256xf32>
    %102 = arith.select %100, %97, %101 : vector<8x256xi1>, vector<8x256xf32>
    %103 = vector.extract_strided_slice %2 {offsets = [0, 0], sizes = [8, 1], strides = [1, 1]} : vector<8x9xf32> to vector<8x1xf32>
    %104 = vector.broadcast %103 : vector<8x1xf32> to vector<8x256xf32>
    %105 = arith.mulf %102, %104 : vector<8x256xf32>
    %106 = arith.addf %96, %105 : vector<8x256xf32>
    %c16_i32_28 = arith.constant 16 : i32
    %107 = tpu.dynamic_rotate %66 by %c16_i32_28 dim 1 : vector<8x256xf32>, i32 -> vector<8x256xf32>
    %cst_29 = arith.constant 0.000000e+00 : f32
    %108 = vector.shape_cast %85 : vector<1x256xi1> to vector<1x256xi1>
    %109 = vector.broadcast %108 : vector<1x256xi1> to vector<8x256xi1>
    %110 = vector.broadcast %cst_29 : f32 to vector<8x256xf32>
    %111 = arith.select %109, %107, %110 : vector<8x256xi1>, vector<8x256xf32>
    %112 = vector.extract_strided_slice %2 {offsets = [0, 1], sizes = [8, 1], strides = [1, 1]} : vector<8x9xf32> to vector<8x1xf32>
    %113 = vector.broadcast %112 : vector<8x1xf32> to vector<8x256xf32>
    %114 = arith.mulf %111, %113 : vector<8x256xf32>
    %115 = arith.addf %106, %114 : vector<8x256xf32>
    %c15_i32_30 = arith.constant 15 : i32
    %116 = tpu.dynamic_rotate %66 by %c15_i32_30 dim 1 : vector<8x256xf32>, i32 -> vector<8x256xf32>
    %117 = arith.andi %85, %91 : vector<1x256xi1>
    %cst_31 = arith.constant 0.000000e+00 : f32
    %118 = vector.shape_cast %117 : vector<1x256xi1> to vector<1x256xi1>
    %119 = vector.broadcast %118 : vector<1x256xi1> to vector<8x256xi1>
    %120 = vector.broadcast %cst_31 : f32 to vector<8x256xf32>
    %121 = arith.select %119, %116, %120 : vector<8x256xi1>, vector<8x256xf32>
    %122 = vector.extract_strided_slice %2 {offsets = [0, 2], sizes = [8, 1], strides = [1, 1]} : vector<8x9xf32> to vector<8x1xf32>
    %123 = vector.broadcast %122 : vector<8x1xf32> to vector<8x256xf32>
    %124 = arith.mulf %121, %123 : vector<8x256xf32>
    %125 = arith.addf %115, %124 : vector<8x256xf32>
    %c1_i32_32 = arith.constant 1 : i32
    %126 = tpu.dynamic_rotate %66 by %c1_i32_32 dim 1 : vector<8x256xf32>, i32 -> vector<8x256xf32>
    %cst_33 = arith.constant 0.000000e+00 : f32
    %127 = vector.shape_cast %89 : vector<1x256xi1> to vector<1x256xi1>
    %128 = vector.broadcast %127 : vector<1x256xi1> to vector<8x256xi1>
    %129 = vector.broadcast %cst_33 : f32 to vector<8x256xf32>
    %130 = arith.select %128, %126, %129 : vector<8x256xi1>, vector<8x256xf32>
    %131 = vector.extract_strided_slice %2 {offsets = [0, 3], sizes = [8, 1], strides = [1, 1]} : vector<8x9xf32> to vector<8x1xf32>
    %132 = vector.broadcast %131 : vector<8x1xf32> to vector<8x256xf32>
    %133 = arith.mulf %130, %132 : vector<8x256xf32>
    %134 = arith.addf %125, %133 : vector<8x256xf32>
    %c255_i32 = arith.constant 255 : i32
    %135 = tpu.dynamic_rotate %66 by %c255_i32 dim 1 : vector<8x256xf32>, i32 -> vector<8x256xf32>
    %cst_34 = arith.constant 0.000000e+00 : f32
    %136 = vector.shape_cast %91 : vector<1x256xi1> to vector<1x256xi1>
    %137 = vector.broadcast %136 : vector<1x256xi1> to vector<8x256xi1>
    %138 = vector.broadcast %cst_34 : f32 to vector<8x256xf32>
    %139 = arith.select %137, %135, %138 : vector<8x256xi1>, vector<8x256xf32>
    %140 = vector.extract_strided_slice %2 {offsets = [0, 5], sizes = [8, 1], strides = [1, 1]} : vector<8x9xf32> to vector<8x1xf32>
    %141 = vector.broadcast %140 : vector<8x1xf32> to vector<8x256xf32>
    %142 = arith.mulf %139, %141 : vector<8x256xf32>
    %143 = arith.addf %134, %142 : vector<8x256xf32>
    %c241_i32 = arith.constant 241 : i32
    %144 = tpu.dynamic_rotate %66 by %c241_i32 dim 1 : vector<8x256xf32>, i32 -> vector<8x256xf32>
    %145 = arith.andi %87, %89 : vector<1x256xi1>
    %cst_35 = arith.constant 0.000000e+00 : f32
    %146 = vector.shape_cast %145 : vector<1x256xi1> to vector<1x256xi1>
    %147 = vector.broadcast %146 : vector<1x256xi1> to vector<8x256xi1>
    %148 = vector.broadcast %cst_35 : f32 to vector<8x256xf32>
    %149 = arith.select %147, %144, %148 : vector<8x256xi1>, vector<8x256xf32>
    %150 = vector.extract_strided_slice %2 {offsets = [0, 6], sizes = [8, 1], strides = [1, 1]} : vector<8x9xf32> to vector<8x1xf32>
    %151 = vector.broadcast %150 : vector<8x1xf32> to vector<8x256xf32>
    %152 = arith.mulf %149, %151 : vector<8x256xf32>
    %153 = arith.addf %143, %152 : vector<8x256xf32>
    %c240_i32_36 = arith.constant 240 : i32
    %154 = tpu.dynamic_rotate %66 by %c240_i32_36 dim 1 : vector<8x256xf32>, i32 -> vector<8x256xf32>
    %cst_37 = arith.constant 0.000000e+00 : f32
    %155 = vector.shape_cast %87 : vector<1x256xi1> to vector<1x256xi1>
    %156 = vector.broadcast %155 : vector<1x256xi1> to vector<8x256xi1>
    %157 = vector.broadcast %cst_37 : f32 to vector<8x256xf32>
    %158 = arith.select %156, %154, %157 : vector<8x256xi1>, vector<8x256xf32>
    %159 = vector.extract_strided_slice %2 {offsets = [0, 7], sizes = [8, 1], strides = [1, 1]} : vector<8x9xf32> to vector<8x1xf32>
    %160 = vector.broadcast %159 : vector<8x1xf32> to vector<8x256xf32>
    %161 = arith.mulf %158, %160 : vector<8x256xf32>
    %162 = arith.addf %153, %161 : vector<8x256xf32>
    %c239_i32 = arith.constant 239 : i32
    %163 = tpu.dynamic_rotate %66 by %c239_i32 dim 1 : vector<8x256xf32>, i32 -> vector<8x256xf32>
    %164 = arith.andi %87, %91 : vector<1x256xi1>
    %cst_38 = arith.constant 0.000000e+00 : f32
    %165 = vector.shape_cast %164 : vector<1x256xi1> to vector<1x256xi1>
    %166 = vector.broadcast %165 : vector<1x256xi1> to vector<8x256xi1>
    %167 = vector.broadcast %cst_38 : f32 to vector<8x256xf32>
    %168 = arith.select %166, %163, %167 : vector<8x256xi1>, vector<8x256xf32>
    %169 = vector.extract_strided_slice %2 {offsets = [0, 8], sizes = [8, 1], strides = [1, 1]} : vector<8x9xf32> to vector<8x1xf32>
    %170 = vector.broadcast %169 : vector<8x1xf32> to vector<8x256xf32>
    %171 = arith.mulf %168, %170 : vector<8x256xf32>
    %172 = arith.addf %162, %171 : vector<8x256xf32>
    %173 = vector.extract_strided_slice %172 {offsets = [0, 0], sizes = [4, 256], strides = [1, 1]} : vector<8x256xf32> to vector<4x256xf32>
    %174 = vector.extract_strided_slice %172 {offsets = [4, 0], sizes = [4, 256], strides = [1, 1]} : vector<8x256xf32> to vector<4x256xf32>
    %175 = arith.mulf %173, %174 : vector<4x256xf32>
    %cst_39 = arith.constant dense<0.000000e+00> : vector<4xf32>
    %176 = vector.multi_reduction <add>, %175, %cst_39 [1] : vector<4x256xf32> to vector<4xf32>
    %177 = vector.shape_cast %176 : vector<4xf32> to vector<4x1xf32>
    %cst_40 = arith.constant 2.560000e+02 : f32
    %178 = vector.broadcast %cst_40 : f32 to vector<4x1xf32>
    %179 = arith.divf %177, %178 : vector<4x1xf32>
    %180 = vector.extract_strided_slice %179 {offsets = [0, 0], sizes = [1, 1], strides = [1, 1]} : vector<4x1xf32> to vector<1x1xf32>
    %181 = vector.extract_strided_slice %4 {offsets = [0, 0], sizes = [4, 1], strides = [1, 1]} : vector<4x4xf32> to vector<4x1xf32>
    %182 = vector.broadcast %180 : vector<1x1xf32> to vector<4x1xf32>
    %183 = arith.mulf %182, %181 : vector<4x1xf32>
    %184 = vector.extract_strided_slice %179 {offsets = [1, 0], sizes = [1, 1], strides = [1, 1]} : vector<4x1xf32> to vector<1x1xf32>
    %185 = vector.extract_strided_slice %4 {offsets = [0, 1], sizes = [4, 1], strides = [1, 1]} : vector<4x4xf32> to vector<4x1xf32>
    %186 = vector.broadcast %184 : vector<1x1xf32> to vector<4x1xf32>
    %187 = arith.mulf %186, %185 : vector<4x1xf32>
    %188 = arith.addf %183, %187 : vector<4x1xf32>
    %189 = vector.extract_strided_slice %179 {offsets = [2, 0], sizes = [1, 1], strides = [1, 1]} : vector<4x1xf32> to vector<1x1xf32>
    %190 = vector.extract_strided_slice %4 {offsets = [0, 2], sizes = [4, 1], strides = [1, 1]} : vector<4x4xf32> to vector<4x1xf32>
    %191 = vector.broadcast %189 : vector<1x1xf32> to vector<4x1xf32>
    %192 = arith.mulf %191, %190 : vector<4x1xf32>
    %193 = arith.addf %188, %192 : vector<4x1xf32>
    %194 = vector.extract_strided_slice %179 {offsets = [3, 0], sizes = [1, 1], strides = [1, 1]} : vector<4x1xf32> to vector<1x1xf32>
    %195 = vector.extract_strided_slice %4 {offsets = [0, 3], sizes = [4, 1], strides = [1, 1]} : vector<4x4xf32> to vector<4x1xf32>
    %196 = vector.broadcast %194 : vector<1x1xf32> to vector<4x1xf32>
    %197 = arith.mulf %196, %195 : vector<4x1xf32>
    %198 = arith.addf %193, %197 : vector<4x1xf32>
    %199 = arith.addf %198, %12 : vector<4x1xf32>
    %200 = vector.broadcast %199 : vector<4x1xf32> to vector<4x256xf32>
    %201 = arith.mulf %175, %200 : vector<4x256xf32>
    %202 = vector.extract_strided_slice %201 {offsets = [0, 0], sizes = [1, 256], strides = [1, 1]} : vector<4x256xf32> to vector<1x256xf32>
    %203 = vector.extract_strided_slice %5 {offsets = [0, 0], sizes = [4, 1], strides = [1, 1]} : vector<4x4xf32> to vector<4x1xf32>
    %204 = vector.broadcast %202 : vector<1x256xf32> to vector<4x256xf32>
    %205 = vector.broadcast %203 : vector<4x1xf32> to vector<4x256xf32>
    %206 = arith.mulf %204, %205 : vector<4x256xf32>
    %207 = vector.extract_strided_slice %201 {offsets = [1, 0], sizes = [1, 256], strides = [1, 1]} : vector<4x256xf32> to vector<1x256xf32>
    %208 = vector.extract_strided_slice %5 {offsets = [0, 1], sizes = [4, 1], strides = [1, 1]} : vector<4x4xf32> to vector<4x1xf32>
    %209 = vector.broadcast %207 : vector<1x256xf32> to vector<4x256xf32>
    %210 = vector.broadcast %208 : vector<4x1xf32> to vector<4x256xf32>
    %211 = arith.mulf %209, %210 : vector<4x256xf32>
    %212 = arith.addf %206, %211 : vector<4x256xf32>
    %213 = vector.extract_strided_slice %201 {offsets = [2, 0], sizes = [1, 256], strides = [1, 1]} : vector<4x256xf32> to vector<1x256xf32>
    %214 = vector.extract_strided_slice %5 {offsets = [0, 2], sizes = [4, 1], strides = [1, 1]} : vector<4x4xf32> to vector<4x1xf32>
    %215 = vector.broadcast %213 : vector<1x256xf32> to vector<4x256xf32>
    %216 = vector.broadcast %214 : vector<4x1xf32> to vector<4x256xf32>
    %217 = arith.mulf %215, %216 : vector<4x256xf32>
    %218 = arith.addf %212, %217 : vector<4x256xf32>
    %219 = vector.extract_strided_slice %201 {offsets = [3, 0], sizes = [1, 256], strides = [1, 1]} : vector<4x256xf32> to vector<1x256xf32>
    %220 = vector.extract_strided_slice %5 {offsets = [0, 3], sizes = [4, 1], strides = [1, 1]} : vector<4x4xf32> to vector<4x1xf32>
    %221 = vector.broadcast %219 : vector<1x256xf32> to vector<4x256xf32>
    %222 = vector.broadcast %220 : vector<4x1xf32> to vector<4x256xf32>
    %223 = arith.mulf %221, %222 : vector<4x256xf32>
    %224 = arith.addf %218, %223 : vector<4x256xf32>
    %225 = vector.broadcast %13 : vector<4x1xf32> to vector<4x256xf32>
    %226 = arith.addf %224, %225 : vector<4x256xf32>
    %227 = vector.broadcast %17 : vector<4x1xf32> to vector<4x256xf32>
    %228 = arith.mulf %226, %227 : vector<4x256xf32>
    %229 = arith.addf %9, %228 : vector<4x256xf32>
    %cst_41 = arith.constant dense<0.000000e+00> : vector<256xf32>
    %230 = vector.multi_reduction <add>, %229, %cst_41 [0] : vector<4x256xf32> to vector<256xf32>
    %231 = vector.shape_cast %230 : vector<256xf32> to vector<1x256xf32>
    %cst_42 = arith.constant 4.000000e+00 : f32
    %232 = vector.broadcast %cst_42 : f32 to vector<1x256xf32>
    %233 = arith.divf %231, %232 : vector<1x256xf32>
    %234 = vector.broadcast %233 : vector<1x256xf32> to vector<4x256xf32>
    %235 = arith.subf %229, %234 : vector<4x256xf32>
    %236 = arith.mulf %235, %235 : vector<4x256xf32>
    %cst_43 = arith.constant dense<0.000000e+00> : vector<256xf32>
    %237 = vector.multi_reduction <add>, %236, %cst_43 [0] : vector<4x256xf32> to vector<256xf32>
    %238 = vector.shape_cast %237 : vector<256xf32> to vector<1x256xf32>
    %cst_44 = arith.constant 4.000000e+00 : f32
    %239 = vector.broadcast %cst_44 : f32 to vector<1x256xf32>
    %240 = arith.divf %238, %239 : vector<1x256xf32>
    %cst_45 = arith.constant 9.99999997E-7 : f32
    %241 = vector.broadcast %cst_45 : f32 to vector<1x256xf32>
    %242 = arith.addf %240, %241 : vector<1x256xf32>
    %243 = math.rsqrt %242 : vector<1x256xf32>
    %244 = vector.broadcast %243 : vector<1x256xf32> to vector<4x256xf32>
    %245 = arith.mulf %235, %244 : vector<4x256xf32>
    %246 = vector.broadcast %14 : vector<4x1xf32> to vector<4x256xf32>
    %247 = arith.mulf %245, %246 : vector<4x256xf32>
    %248 = vector.broadcast %15 : vector<4x1xf32> to vector<4x256xf32>
    %249 = arith.addf %247, %248 : vector<4x256xf32>
    %250 = vector.extract_strided_slice %249 {offsets = [0, 0], sizes = [1, 256], strides = [1, 1]} : vector<4x256xf32> to vector<1x256xf32>
    %251 = vector.extract_strided_slice %6 {offsets = [0, 0], sizes = [8, 1], strides = [1, 1]} : vector<8x4xf32> to vector<8x1xf32>
    %252 = vector.broadcast %250 : vector<1x256xf32> to vector<8x256xf32>
    %253 = vector.broadcast %251 : vector<8x1xf32> to vector<8x256xf32>
    %254 = arith.mulf %252, %253 : vector<8x256xf32>
    %255 = vector.extract_strided_slice %249 {offsets = [1, 0], sizes = [1, 256], strides = [1, 1]} : vector<4x256xf32> to vector<1x256xf32>
    %256 = vector.extract_strided_slice %6 {offsets = [0, 1], sizes = [8, 1], strides = [1, 1]} : vector<8x4xf32> to vector<8x1xf32>
    %257 = vector.broadcast %255 : vector<1x256xf32> to vector<8x256xf32>
    %258 = vector.broadcast %256 : vector<8x1xf32> to vector<8x256xf32>
    %259 = arith.mulf %257, %258 : vector<8x256xf32>
    %260 = arith.addf %254, %259 : vector<8x256xf32>
    %261 = vector.extract_strided_slice %249 {offsets = [2, 0], sizes = [1, 256], strides = [1, 1]} : vector<4x256xf32> to vector<1x256xf32>
    %262 = vector.extract_strided_slice %6 {offsets = [0, 2], sizes = [8, 1], strides = [1, 1]} : vector<8x4xf32> to vector<8x1xf32>
    %263 = vector.broadcast %261 : vector<1x256xf32> to vector<8x256xf32>
    %264 = vector.broadcast %262 : vector<8x1xf32> to vector<8x256xf32>
    %265 = arith.mulf %263, %264 : vector<8x256xf32>
    %266 = arith.addf %260, %265 : vector<8x256xf32>
    %267 = vector.extract_strided_slice %249 {offsets = [3, 0], sizes = [1, 256], strides = [1, 1]} : vector<4x256xf32> to vector<1x256xf32>
    %268 = vector.extract_strided_slice %6 {offsets = [0, 3], sizes = [8, 1], strides = [1, 1]} : vector<8x4xf32> to vector<8x1xf32>
    %269 = vector.broadcast %267 : vector<1x256xf32> to vector<8x256xf32>
    %270 = vector.broadcast %268 : vector<8x1xf32> to vector<8x256xf32>
    %271 = arith.mulf %269, %270 : vector<8x256xf32>
    %272 = arith.addf %266, %271 : vector<8x256xf32>
    %273 = vector.broadcast %21 : vector<8x1xf32> to vector<8x256xf32>
    %274 = arith.addf %272, %273 : vector<8x256xf32>
    %275 = vector.extract_strided_slice %274 {offsets = [0, 0], sizes = [4, 256], strides = [1, 1]} : vector<8x256xf32> to vector<4x256xf32>
    %276 = vector.extract_strided_slice %274 {offsets = [4, 0], sizes = [4, 256], strides = [1, 1]} : vector<8x256xf32> to vector<4x256xf32>
    %277 = arith.mulf %275, %276 : vector<4x256xf32>
    %278 = vector.extract_strided_slice %277 {offsets = [0, 0], sizes = [1, 256], strides = [1, 1]} : vector<4x256xf32> to vector<1x256xf32>
    %279 = vector.extract_strided_slice %7 {offsets = [0, 0], sizes = [4, 1], strides = [1, 1]} : vector<4x4xf32> to vector<4x1xf32>
    %280 = vector.broadcast %278 : vector<1x256xf32> to vector<4x256xf32>
    %281 = vector.broadcast %279 : vector<4x1xf32> to vector<4x256xf32>
    %282 = arith.mulf %280, %281 : vector<4x256xf32>
    %283 = vector.extract_strided_slice %277 {offsets = [1, 0], sizes = [1, 256], strides = [1, 1]} : vector<4x256xf32> to vector<1x256xf32>
    %284 = vector.extract_strided_slice %7 {offsets = [0, 1], sizes = [4, 1], strides = [1, 1]} : vector<4x4xf32> to vector<4x1xf32>
    %285 = vector.broadcast %283 : vector<1x256xf32> to vector<4x256xf32>
    %286 = vector.broadcast %284 : vector<4x1xf32> to vector<4x256xf32>
    %287 = arith.mulf %285, %286 : vector<4x256xf32>
    %288 = arith.addf %282, %287 : vector<4x256xf32>
    %289 = vector.extract_strided_slice %277 {offsets = [2, 0], sizes = [1, 256], strides = [1, 1]} : vector<4x256xf32> to vector<1x256xf32>
    %290 = vector.extract_strided_slice %7 {offsets = [0, 2], sizes = [4, 1], strides = [1, 1]} : vector<4x4xf32> to vector<4x1xf32>
    %291 = vector.broadcast %289 : vector<1x256xf32> to vector<4x256xf32>
    %292 = vector.broadcast %290 : vector<4x1xf32> to vector<4x256xf32>
    %293 = arith.mulf %291, %292 : vector<4x256xf32>
    %294 = arith.addf %288, %293 : vector<4x256xf32>
    %295 = vector.extract_strided_slice %277 {offsets = [3, 0], sizes = [1, 256], strides = [1, 1]} : vector<4x256xf32> to vector<1x256xf32>
    %296 = vector.extract_strided_slice %7 {offsets = [0, 3], sizes = [4, 1], strides = [1, 1]} : vector<4x4xf32> to vector<4x1xf32>
    %297 = vector.broadcast %295 : vector<1x256xf32> to vector<4x256xf32>
    %298 = vector.broadcast %296 : vector<4x1xf32> to vector<4x256xf32>
    %299 = arith.mulf %297, %298 : vector<4x256xf32>
    %300 = arith.addf %294, %299 : vector<4x256xf32>
    %301 = vector.broadcast %16 : vector<4x1xf32> to vector<4x256xf32>
    %302 = arith.addf %300, %301 : vector<4x256xf32>
    %303 = vector.broadcast %18 : vector<4x1xf32> to vector<4x256xf32>
    %304 = arith.mulf %302, %303 : vector<4x256xf32>
    %305 = arith.addf %229, %304 : vector<4x256xf32>
    %c0_46 = arith.constant 0 : index
    %c0_47 = arith.constant 0 : index
    %c0_48 = arith.constant 0 : index
    %306 = vector.load %arg11[%c0_46, %c0_47, %c0_48] : memref<1x4x256xf32, #tpu.memory_space<vmem>>, vector<1x4x256xf32>
    %307 = vector.shape_cast %306 : vector<1x4x256xf32> to vector<4x256xf32>
    %308 = vector.shape_cast %305 : vector<4x256xf32> to vector<1x4x256xf32>
    tpu.vector_store %arg11[%c0_46, %c0_47, %c0_48], %308 {strides = array<i32>} : memref<1x4x256xf32, #tpu.memory_space<vmem>>, vector<1x4x256xf32>,
    %c0_49 = arith.constant 0 : index
    %c0_50 = arith.constant 0 : index
    %c0_51 = arith.constant 0 : index
    %309 = vector.load %arg2[%c0_49, %c0_50, %c0_51] : memref<1x4x256xf32, #tpu.memory_space<vmem>>, vector<1x4x256xf32>
    %310 = vector.shape_cast %309 : vector<1x4x256xf32> to vector<4x256xf32>
    %311 = vector.extract_strided_slice %0 {offsets = [0, 0], sizes = [4, 1], strides = [1, 1]} : vector<4x9xf32> to vector<4x1xf32>
    %312 = vector.extract_strided_slice %0 {offsets = [0, 1], sizes = [4, 1], strides = [1, 1]} : vector<4x9xf32> to vector<4x1xf32>
    %313 = vector.extract_strided_slice %0 {offsets = [0, 2], sizes = [4, 1], strides = [1, 1]} : vector<4x9xf32> to vector<4x1xf32>
    %314 = vector.extract_strided_slice %0 {offsets = [0, 3], sizes = [4, 1], strides = [1, 1]} : vector<4x9xf32> to vector<4x1xf32>
    %315 = vector.extract_strided_slice %0 {offsets = [0, 4], sizes = [4, 1], strides = [1, 1]} : vector<4x9xf32> to vector<4x1xf32>
    %316 = vector.extract_strided_slice %0 {offsets = [0, 5], sizes = [4, 1], strides = [1, 1]} : vector<4x9xf32> to vector<4x1xf32>
    %317 = vector.extract_strided_slice %0 {offsets = [0, 6], sizes = [4, 1], strides = [1, 1]} : vector<4x9xf32> to vector<4x1xf32>
    %318 = vector.extract_strided_slice %0 {offsets = [0, 7], sizes = [4, 1], strides = [1, 1]} : vector<4x9xf32> to vector<4x1xf32>
    %319 = vector.extract_strided_slice %0 {offsets = [0, 8], sizes = [4, 1], strides = [1, 1]} : vector<4x9xf32> to vector<4x1xf32>
    %320 = vector.extract_strided_slice %1 {offsets = [0, 0], sizes = [8, 1], strides = [1, 1]} : vector<8x3xf32> to vector<8x1xf32>
    %321 = vector.extract_strided_slice %1 {offsets = [0, 1], sizes = [8, 1], strides = [1, 1]} : vector<8x3xf32> to vector<8x1xf32>
    %322 = vector.extract_strided_slice %1 {offsets = [0, 2], sizes = [8, 1], strides = [1, 1]} : vector<8x3xf32> to vector<8x1xf32>
    %cst_52 = arith.constant dense<0.000000e+00> : vector<256xf32>
    %323 = vector.multi_reduction <add>, %310, %cst_52 [0] : vector<4x256xf32> to vector<256xf32>
    %324 = vector.shape_cast %323 : vector<256xf32> to vector<1x256xf32>
    %cst_53 = arith.constant 4.000000e+00 : f32
    %325 = vector.broadcast %cst_53 : f32 to vector<1x256xf32>
    %326 = arith.divf %324, %325 : vector<1x256xf32>
    %327 = vector.broadcast %326 : vector<1x256xf32> to vector<4x256xf32>
    %328 = arith.subf %310, %327 : vector<4x256xf32>
    %329 = arith.mulf %328, %328 : vector<4x256xf32>
    %cst_54 = arith.constant dense<0.000000e+00> : vector<256xf32>
    %330 = vector.multi_reduction <add>, %329, %cst_54 [0] : vector<4x256xf32> to vector<256xf32>
    %331 = vector.shape_cast %330 : vector<256xf32> to vector<1x256xf32>
    %cst_55 = arith.constant 4.000000e+00 : f32
    %332 = vector.broadcast %cst_55 : f32 to vector<1x256xf32>
    %333 = arith.divf %331, %332 : vector<1x256xf32>
    %cst_56 = arith.constant 9.99999997E-7 : f32
    %334 = vector.broadcast %cst_56 : f32 to vector<1x256xf32>
    %335 = arith.addf %333, %334 : vector<1x256xf32>
    %336 = math.rsqrt %335 : vector<1x256xf32>
    %337 = vector.broadcast %336 : vector<1x256xf32> to vector<4x256xf32>
    %338 = arith.mulf %328, %337 : vector<4x256xf32>
    %339 = vector.broadcast %311 : vector<4x1xf32> to vector<4x256xf32>
    %340 = arith.mulf %338, %339 : vector<4x256xf32>
    %341 = vector.broadcast %312 : vector<4x1xf32> to vector<4x256xf32>
    %342 = arith.addf %340, %341 : vector<4x256xf32>
    %343 = vector.extract_strided_slice %342 {offsets = [0, 0], sizes = [1, 256], strides = [1, 1]} : vector<4x256xf32> to vector<1x256xf32>
    %344 = vector.extract_strided_slice %3 {offsets = [0, 0], sizes = [8, 1], strides = [1, 1]} : vector<8x4xf32> to vector<8x1xf32>
    %345 = vector.broadcast %343 : vector<1x256xf32> to vector<8x256xf32>
    %346 = vector.broadcast %344 : vector<8x1xf32> to vector<8x256xf32>
    %347 = arith.mulf %345, %346 : vector<8x256xf32>
    %348 = vector.extract_strided_slice %342 {offsets = [1, 0], sizes = [1, 256], strides = [1, 1]} : vector<4x256xf32> to vector<1x256xf32>
    %349 = vector.extract_strided_slice %3 {offsets = [0, 1], sizes = [8, 1], strides = [1, 1]} : vector<8x4xf32> to vector<8x1xf32>
    %350 = vector.broadcast %348 : vector<1x256xf32> to vector<8x256xf32>
    %351 = vector.broadcast %349 : vector<8x1xf32> to vector<8x256xf32>
    %352 = arith.mulf %350, %351 : vector<8x256xf32>
    %353 = arith.addf %347, %352 : vector<8x256xf32>
    %354 = vector.extract_strided_slice %342 {offsets = [2, 0], sizes = [1, 256], strides = [1, 1]} : vector<4x256xf32> to vector<1x256xf32>
    %355 = vector.extract_strided_slice %3 {offsets = [0, 2], sizes = [8, 1], strides = [1, 1]} : vector<8x4xf32> to vector<8x1xf32>
    %356 = vector.broadcast %354 : vector<1x256xf32> to vector<8x256xf32>
    %357 = vector.broadcast %355 : vector<8x1xf32> to vector<8x256xf32>
    %358 = arith.mulf %356, %357 : vector<8x256xf32>
    %359 = arith.addf %353, %358 : vector<8x256xf32>
    %360 = vector.extract_strided_slice %342 {offsets = [3, 0], sizes = [1, 256], strides = [1, 1]} : vector<4x256xf32> to vector<1x256xf32>
    %361 = vector.extract_strided_slice %3 {offsets = [0, 3], sizes = [8, 1], strides = [1, 1]} : vector<8x4xf32> to vector<8x1xf32>
    %362 = vector.broadcast %360 : vector<1x256xf32> to vector<8x256xf32>
    %363 = vector.broadcast %361 : vector<8x1xf32> to vector<8x256xf32>
    %364 = arith.mulf %362, %363 : vector<8x256xf32>
    %365 = arith.addf %359, %364 : vector<8x256xf32>
    %366 = vector.broadcast %320 : vector<8x1xf32> to vector<8x256xf32>
    %367 = arith.addf %365, %366 : vector<8x256xf32>
    %368 = tpu.iota {dimensions = array<i32: 1>} : vector<1x256xi32>
    %c16_i32_57 = arith.constant 16 : i32
    %c0_i32_58 = arith.constant 0 : i32
    %369 = arith.cmpi eq, %c16_i32_57, %c0_i32_58 : i32
    %c1_i32_59 = arith.constant 1 : i32
    %370 = arith.select %369, %c1_i32_59, %c16_i32_57 : i32
    %371 = vector.broadcast %370 : i32 to vector<1x256xi32>
    %372 = arith.remsi %368, %371 : vector<1x256xi32>
    %c0_i32_60 = arith.constant 0 : i32
    %373 = vector.broadcast %c0_i32_60 : i32 to vector<1x256xi32>
    %374 = arith.cmpi ne, %372, %373 : vector<1x256xi32>
    %c0_i32_61 = arith.constant 0 : i32
    %375 = vector.broadcast %c0_i32_61 : i32 to vector<1x256xi32>
    %376 = arith.cmpi slt, %372, %375 : vector<1x256xi32>
    %c0_i32_62 = arith.constant 0 : i32
    %377 = arith.cmpi slt, %370, %c0_i32_62 : i32
    %378 = vector.broadcast %377 : i1 to vector<1x256xi1>
    %379 = vector.broadcast %378 : vector<1x256xi1> to vector<1x256xi1>
    %380 = arith.xori %376, %379 : vector<1x256xi1>
    %381 = arith.andi %380, %374 : vector<1x256xi1>
    %382 = vector.broadcast %370 : i32 to vector<1x256xi32>
    %383 = arith.addi %372, %382 : vector<1x256xi32>
    %384 = arith.select %381, %383, %372 : vector<1x256xi1>, vector<1x256xi32>
    %c16_i32_63 = arith.constant 16 : i32
    %385 = vector.broadcast %c16_i32_63 : i32 to vector<1x256xi32>
    %386 = arith.cmpi sge, %368, %385 : vector<1x256xi32>
    %c240_i32_64 = arith.constant 240 : i32
    %387 = vector.broadcast %c240_i32_64 : i32 to vector<1x256xi32>
    %388 = arith.cmpi slt, %368, %387 : vector<1x256xi32>
    %c0_i32_65 = arith.constant 0 : i32
    %389 = vector.broadcast %c0_i32_65 : i32 to vector<1x256xi32>
    %390 = arith.cmpi sgt, %384, %389 : vector<1x256xi32>
    %c15_i32_66 = arith.constant 15 : i32
    %391 = vector.broadcast %c15_i32_66 : i32 to vector<1x256xi32>
    %392 = arith.cmpi slt, %384, %391 : vector<1x256xi32>
    %393 = vector.extract_strided_slice %2 {offsets = [0, 4], sizes = [8, 1], strides = [1, 1]} : vector<8x9xf32> to vector<8x1xf32>
    %394 = vector.broadcast %393 : vector<8x1xf32> to vector<8x256xf32>
    %395 = arith.mulf %367, %394 : vector<8x256xf32>
    %396 = vector.broadcast %321 : vector<8x1xf32> to vector<8x256xf32>
    %397 = arith.addf %395, %396 : vector<8x256xf32>
    %c17_i32_67 = arith.constant 17 : i32
    %398 = tpu.dynamic_rotate %367 by %c17_i32_67 dim 1 : vector<8x256xf32>, i32 -> vector<8x256xf32>
    %399 = arith.andi %386, %390 : vector<1x256xi1>
    %cst_68 = arith.constant 0.000000e+00 : f32
    %400 = vector.shape_cast %399 : vector<1x256xi1> to vector<1x256xi1>
    %401 = vector.broadcast %400 : vector<1x256xi1> to vector<8x256xi1>
    %402 = vector.broadcast %cst_68 : f32 to vector<8x256xf32>
    %403 = arith.select %401, %398, %402 : vector<8x256xi1>, vector<8x256xf32>
    %404 = vector.extract_strided_slice %2 {offsets = [0, 0], sizes = [8, 1], strides = [1, 1]} : vector<8x9xf32> to vector<8x1xf32>
    %405 = vector.broadcast %404 : vector<8x1xf32> to vector<8x256xf32>
    %406 = arith.mulf %403, %405 : vector<8x256xf32>
    %407 = arith.addf %397, %406 : vector<8x256xf32>
    %c16_i32_69 = arith.constant 16 : i32
    %408 = tpu.dynamic_rotate %367 by %c16_i32_69 dim 1 : vector<8x256xf32>, i32 -> vector<8x256xf32>
    %cst_70 = arith.constant 0.000000e+00 : f32
    %409 = vector.shape_cast %386 : vector<1x256xi1> to vector<1x256xi1>
    %410 = vector.broadcast %409 : vector<1x256xi1> to vector<8x256xi1>
    %411 = vector.broadcast %cst_70 : f32 to vector<8x256xf32>
    %412 = arith.select %410, %408, %411 : vector<8x256xi1>, vector<8x256xf32>
    %413 = vector.extract_strided_slice %2 {offsets = [0, 1], sizes = [8, 1], strides = [1, 1]} : vector<8x9xf32> to vector<8x1xf32>
    %414 = vector.broadcast %413 : vector<8x1xf32> to vector<8x256xf32>
    %415 = arith.mulf %412, %414 : vector<8x256xf32>
    %416 = arith.addf %407, %415 : vector<8x256xf32>
    %c15_i32_71 = arith.constant 15 : i32
    %417 = tpu.dynamic_rotate %367 by %c15_i32_71 dim 1 : vector<8x256xf32>, i32 -> vector<8x256xf32>
    %418 = arith.andi %386, %392 : vector<1x256xi1>
    %cst_72 = arith.constant 0.000000e+00 : f32
    %419 = vector.shape_cast %418 : vector<1x256xi1> to vector<1x256xi1>
    %420 = vector.broadcast %419 : vector<1x256xi1> to vector<8x256xi1>
    %421 = vector.broadcast %cst_72 : f32 to vector<8x256xf32>
    %422 = arith.select %420, %417, %421 : vector<8x256xi1>, vector<8x256xf32>
    %423 = vector.extract_strided_slice %2 {offsets = [0, 2], sizes = [8, 1], strides = [1, 1]} : vector<8x9xf32> to vector<8x1xf32>
    %424 = vector.broadcast %423 : vector<8x1xf32> to vector<8x256xf32>
    %425 = arith.mulf %422, %424 : vector<8x256xf32>
    %426 = arith.addf %416, %425 : vector<8x256xf32>
    %c1_i32_73 = arith.constant 1 : i32
    %427 = tpu.dynamic_rotate %367 by %c1_i32_73 dim 1 : vector<8x256xf32>, i32 -> vector<8x256xf32>
    %cst_74 = arith.constant 0.000000e+00 : f32
    %428 = vector.shape_cast %390 : vector<1x256xi1> to vector<1x256xi1>
    %429 = vector.broadcast %428 : vector<1x256xi1> to vector<8x256xi1>
    %430 = vector.broadcast %cst_74 : f32 to vector<8x256xf32>
    %431 = arith.select %429, %427, %430 : vector<8x256xi1>, vector<8x256xf32>
    %432 = vector.extract_strided_slice %2 {offsets = [0, 3], sizes = [8, 1], strides = [1, 1]} : vector<8x9xf32> to vector<8x1xf32>
    %433 = vector.broadcast %432 : vector<8x1xf32> to vector<8x256xf32>
    %434 = arith.mulf %431, %433 : vector<8x256xf32>
    %435 = arith.addf %426, %434 : vector<8x256xf32>
    %c255_i32_75 = arith.constant 255 : i32
    %436 = tpu.dynamic_rotate %367 by %c255_i32_75 dim 1 : vector<8x256xf32>, i32 -> vector<8x256xf32>
    %cst_76 = arith.constant 0.000000e+00 : f32
    %437 = vector.shape_cast %392 : vector<1x256xi1> to vector<1x256xi1>
    %438 = vector.broadcast %437 : vector<1x256xi1> to vector<8x256xi1>
    %439 = vector.broadcast %cst_76 : f32 to vector<8x256xf32>
    %440 = arith.select %438, %436, %439 : vector<8x256xi1>, vector<8x256xf32>
    %441 = vector.extract_strided_slice %2 {offsets = [0, 5], sizes = [8, 1], strides = [1, 1]} : vector<8x9xf32> to vector<8x1xf32>
    %442 = vector.broadcast %441 : vector<8x1xf32> to vector<8x256xf32>
    %443 = arith.mulf %440, %442 : vector<8x256xf32>
    %444 = arith.addf %435, %443 : vector<8x256xf32>
    %c241_i32_77 = arith.constant 241 : i32
    %445 = tpu.dynamic_rotate %367 by %c241_i32_77 dim 1 : vector<8x256xf32>, i32 -> vector<8x256xf32>
    %446 = arith.andi %388, %390 : vector<1x256xi1>
    %cst_78 = arith.constant 0.000000e+00 : f32
    %447 = vector.shape_cast %446 : vector<1x256xi1> to vector<1x256xi1>
    %448 = vector.broadcast %447 : vector<1x256xi1> to vector<8x256xi1>
    %449 = vector.broadcast %cst_78 : f32 to vector<8x256xf32>
    %450 = arith.select %448, %445, %449 : vector<8x256xi1>, vector<8x256xf32>
    %451 = vector.extract_strided_slice %2 {offsets = [0, 6], sizes = [8, 1], strides = [1, 1]} : vector<8x9xf32> to vector<8x1xf32>
    %452 = vector.broadcast %451 : vector<8x1xf32> to vector<8x256xf32>
    %453 = arith.mulf %450, %452 : vector<8x256xf32>
    %454 = arith.addf %444, %453 : vector<8x256xf32>
    %c240_i32_79 = arith.constant 240 : i32
    %455 = tpu.dynamic_rotate %367 by %c240_i32_79 dim 1 : vector<8x256xf32>, i32 -> vector<8x256xf32>
    %cst_80 = arith.constant 0.000000e+00 : f32
    %456 = vector.shape_cast %388 : vector<1x256xi1> to vector<1x256xi1>
    %457 = vector.broadcast %456 : vector<1x256xi1> to vector<8x256xi1>
    %458 = vector.broadcast %cst_80 : f32 to vector<8x256xf32>
    %459 = arith.select %457, %455, %458 : vector<8x256xi1>, vector<8x256xf32>
    %460 = vector.extract_strided_slice %2 {offsets = [0, 7], sizes = [8, 1], strides = [1, 1]} : vector<8x9xf32> to vector<8x1xf32>
    %461 = vector.broadcast %460 : vector<8x1xf32> to vector<8x256xf32>
    %462 = arith.mulf %459, %461 : vector<8x256xf32>
    %463 = arith.addf %454, %462 : vector<8x256xf32>
    %c239_i32_81 = arith.constant 239 : i32
    %464 = tpu.dynamic_rotate %367 by %c239_i32_81 dim 1 : vector<8x256xf32>, i32 -> vector<8x256xf32>
    %465 = arith.andi %388, %392 : vector<1x256xi1>
    %cst_82 = arith.constant 0.000000e+00 : f32
    %466 = vector.shape_cast %465 : vector<1x256xi1> to vector<1x256xi1>
    %467 = vector.broadcast %466 : vector<1x256xi1> to vector<8x256xi1>
    %468 = vector.broadcast %cst_82 : f32 to vector<8x256xf32>
    %469 = arith.select %467, %464, %468 : vector<8x256xi1>, vector<8x256xf32>
    %470 = vector.extract_strided_slice %2 {offsets = [0, 8], sizes = [8, 1], strides = [1, 1]} : vector<8x9xf32> to vector<8x1xf32>
    %471 = vector.broadcast %470 : vector<8x1xf32> to vector<8x256xf32>
    %472 = arith.mulf %469, %471 : vector<8x256xf32>
    %473 = arith.addf %463, %472 : vector<8x256xf32>
    %474 = vector.extract_strided_slice %473 {offsets = [0, 0], sizes = [4, 256], strides = [1, 1]} : vector<8x256xf32> to vector<4x256xf32>
    %475 = vector.extract_strided_slice %473 {offsets = [4, 0], sizes = [4, 256], strides = [1, 1]} : vector<8x256xf32> to vector<4x256xf32>
    %476 = arith.mulf %474, %475 : vector<4x256xf32>
    %cst_83 = arith.constant dense<0.000000e+00> : vector<4xf32>
    %477 = vector.multi_reduction <add>, %476, %cst_83 [1] : vector<4x256xf32> to vector<4xf32>
    %478 = vector.shape_cast %477 : vector<4xf32> to vector<4x1xf32>
    %cst_84 = arith.constant 2.560000e+02 : f32
    %479 = vector.broadcast %cst_84 : f32 to vector<4x1xf32>
    %480 = arith.divf %478, %479 : vector<4x1xf32>
    %481 = vector.extract_strided_slice %480 {offsets = [0, 0], sizes = [1, 1], strides = [1, 1]} : vector<4x1xf32> to vector<1x1xf32>
    %482 = vector.extract_strided_slice %4 {offsets = [0, 0], sizes = [4, 1], strides = [1, 1]} : vector<4x4xf32> to vector<4x1xf32>
    %483 = vector.broadcast %481 : vector<1x1xf32> to vector<4x1xf32>
    %484 = arith.mulf %483, %482 : vector<4x1xf32>
    %485 = vector.extract_strided_slice %480 {offsets = [1, 0], sizes = [1, 1], strides = [1, 1]} : vector<4x1xf32> to vector<1x1xf32>
    %486 = vector.extract_strided_slice %4 {offsets = [0, 1], sizes = [4, 1], strides = [1, 1]} : vector<4x4xf32> to vector<4x1xf32>
    %487 = vector.broadcast %485 : vector<1x1xf32> to vector<4x1xf32>
    %488 = arith.mulf %487, %486 : vector<4x1xf32>
    %489 = arith.addf %484, %488 : vector<4x1xf32>
    %490 = vector.extract_strided_slice %480 {offsets = [2, 0], sizes = [1, 1], strides = [1, 1]} : vector<4x1xf32> to vector<1x1xf32>
    %491 = vector.extract_strided_slice %4 {offsets = [0, 2], sizes = [4, 1], strides = [1, 1]} : vector<4x4xf32> to vector<4x1xf32>
    %492 = vector.broadcast %490 : vector<1x1xf32> to vector<4x1xf32>
    %493 = arith.mulf %492, %491 : vector<4x1xf32>
    %494 = arith.addf %489, %493 : vector<4x1xf32>
    %495 = vector.extract_strided_slice %480 {offsets = [3, 0], sizes = [1, 1], strides = [1, 1]} : vector<4x1xf32> to vector<1x1xf32>
    %496 = vector.extract_strided_slice %4 {offsets = [0, 3], sizes = [4, 1], strides = [1, 1]} : vector<4x4xf32> to vector<4x1xf32>
    %497 = vector.broadcast %495 : vector<1x1xf32> to vector<4x1xf32>
    %498 = arith.mulf %497, %496 : vector<4x1xf32>
    %499 = arith.addf %494, %498 : vector<4x1xf32>
    %500 = arith.addf %499, %313 : vector<4x1xf32>
    %501 = vector.broadcast %500 : vector<4x1xf32> to vector<4x256xf32>
    %502 = arith.mulf %476, %501 : vector<4x256xf32>
    %503 = vector.extract_strided_slice %502 {offsets = [0, 0], sizes = [1, 256], strides = [1, 1]} : vector<4x256xf32> to vector<1x256xf32>
    %504 = vector.extract_strided_slice %5 {offsets = [0, 0], sizes = [4, 1], strides = [1, 1]} : vector<4x4xf32> to vector<4x1xf32>
    %505 = vector.broadcast %503 : vector<1x256xf32> to vector<4x256xf32>
    %506 = vector.broadcast %504 : vector<4x1xf32> to vector<4x256xf32>
    %507 = arith.mulf %505, %506 : vector<4x256xf32>
    %508 = vector.extract_strided_slice %502 {offsets = [1, 0], sizes = [1, 256], strides = [1, 1]} : vector<4x256xf32> to vector<1x256xf32>
    %509 = vector.extract_strided_slice %5 {offsets = [0, 1], sizes = [4, 1], strides = [1, 1]} : vector<4x4xf32> to vector<4x1xf32>
    %510 = vector.broadcast %508 : vector<1x256xf32> to vector<4x256xf32>
    %511 = vector.broadcast %509 : vector<4x1xf32> to vector<4x256xf32>
    %512 = arith.mulf %510, %511 : vector<4x256xf32>
    %513 = arith.addf %507, %512 : vector<4x256xf32>
    %514 = vector.extract_strided_slice %502 {offsets = [2, 0], sizes = [1, 256], strides = [1, 1]} : vector<4x256xf32> to vector<1x256xf32>
    %515 = vector.extract_strided_slice %5 {offsets = [0, 2], sizes = [4, 1], strides = [1, 1]} : vector<4x4xf32> to vector<4x1xf32>
    %516 = vector.broadcast %514 : vector<1x256xf32> to vector<4x256xf32>
    %517 = vector.broadcast %515 : vector<4x1xf32> to vector<4x256xf32>
    %518 = arith.mulf %516, %517 : vector<4x256xf32>
    %519 = arith.addf %513, %518 : vector<4x256xf32>
    %520 = vector.extract_strided_slice %502 {offsets = [3, 0], sizes = [1, 256], strides = [1, 1]} : vector<4x256xf32> to vector<1x256xf32>
    %521 = vector.extract_strided_slice %5 {offsets = [0, 3], sizes = [4, 1], strides = [1, 1]} : vector<4x4xf32> to vector<4x1xf32>
    %522 = vector.broadcast %520 : vector<1x256xf32> to vector<4x256xf32>
    %523 = vector.broadcast %521 : vector<4x1xf32> to vector<4x256xf32>
    %524 = arith.mulf %522, %523 : vector<4x256xf32>
    %525 = arith.addf %519, %524 : vector<4x256xf32>
    %526 = vector.broadcast %314 : vector<4x1xf32> to vector<4x256xf32>
    %527 = arith.addf %525, %526 : vector<4x256xf32>
    %528 = vector.broadcast %318 : vector<4x1xf32> to vector<4x256xf32>
    %529 = arith.mulf %527, %528 : vector<4x256xf32>
    %530 = arith.addf %310, %529 : vector<4x256xf32>
    %cst_85 = arith.constant dense<0.000000e+00> : vector<256xf32>
    %531 = vector.multi_reduction <add>, %530, %cst_85 [0] : vector<4x256xf32> to vector<256xf32>
    %532 = vector.shape_cast %531 : vector<256xf32> to vector<1x256xf32>
    %cst_86 = arith.constant 4.000000e+00 : f32
    %533 = vector.broadcast %cst_86 : f32 to vector<1x256xf32>
    %534 = arith.divf %532, %533 : vector<1x256xf32>
    %535 = vector.broadcast %534 : vector<1x256xf32> to vector<4x256xf32>
    %536 = arith.subf %530, %535 : vector<4x256xf32>
    %537 = arith.mulf %536, %536 : vector<4x256xf32>
    %cst_87 = arith.constant dense<0.000000e+00> : vector<256xf32>
    %538 = vector.multi_reduction <add>, %537, %cst_87 [0] : vector<4x256xf32> to vector<256xf32>
    %539 = vector.shape_cast %538 : vector<256xf32> to vector<1x256xf32>
    %cst_88 = arith.constant 4.000000e+00 : f32
    %540 = vector.broadcast %cst_88 : f32 to vector<1x256xf32>
    %541 = arith.divf %539, %540 : vector<1x256xf32>
    %cst_89 = arith.constant 9.99999997E-7 : f32
    %542 = vector.broadcast %cst_89 : f32 to vector<1x256xf32>
    %543 = arith.addf %541, %542 : vector<1x256xf32>
    %544 = math.rsqrt %543 : vector<1x256xf32>
    %545 = vector.broadcast %544 : vector<1x256xf32> to vector<4x256xf32>
    %546 = arith.mulf %536, %545 : vector<4x256xf32>
    %547 = vector.broadcast %315 : vector<4x1xf32> to vector<4x256xf32>
    %548 = arith.mulf %546, %547 : vector<4x256xf32>
    %549 = vector.broadcast %316 : vector<4x1xf32> to vector<4x256xf32>
    %550 = arith.addf %548, %549 : vector<4x256xf32>
    %551 = vector.extract_strided_slice %550 {offsets = [0, 0], sizes = [1, 256], strides = [1, 1]} : vector<4x256xf32> to vector<1x256xf32>
    %552 = vector.extract_strided_slice %6 {offsets = [0, 0], sizes = [8, 1], strides = [1, 1]} : vector<8x4xf32> to vector<8x1xf32>
    %553 = vector.broadcast %551 : vector<1x256xf32> to vector<8x256xf32>
    %554 = vector.broadcast %552 : vector<8x1xf32> to vector<8x256xf32>
    %555 = arith.mulf %553, %554 : vector<8x256xf32>
    %556 = vector.extract_strided_slice %550 {offsets = [1, 0], sizes = [1, 256], strides = [1, 1]} : vector<4x256xf32> to vector<1x256xf32>
    %557 = vector.extract_strided_slice %6 {offsets = [0, 1], sizes = [8, 1], strides = [1, 1]} : vector<8x4xf32> to vector<8x1xf32>
    %558 = vector.broadcast %556 : vector<1x256xf32> to vector<8x256xf32>
    %559 = vector.broadcast %557 : vector<8x1xf32> to vector<8x256xf32>
    %560 = arith.mulf %558, %559 : vector<8x256xf32>
    %561 = arith.addf %555, %560 : vector<8x256xf32>
    %562 = vector.extract_strided_slice %550 {offsets = [2, 0], sizes = [1, 256], strides = [1, 1]} : vector<4x256xf32> to vector<1x256xf32>
    %563 = vector.extract_strided_slice %6 {offsets = [0, 2], sizes = [8, 1], strides = [1, 1]} : vector<8x4xf32> to vector<8x1xf32>
    %564 = vector.broadcast %562 : vector<1x256xf32> to vector<8x256xf32>
    %565 = vector.broadcast %563 : vector<8x1xf32> to vector<8x256xf32>
    %566 = arith.mulf %564, %565 : vector<8x256xf32>
    %567 = arith.addf %561, %566 : vector<8x256xf32>
    %568 = vector.extract_strided_slice %550 {offsets = [3, 0], sizes = [1, 256], strides = [1, 1]} : vector<4x256xf32> to vector<1x256xf32>
    %569 = vector.extract_strided_slice %6 {offsets = [0, 3], sizes = [8, 1], strides = [1, 1]} : vector<8x4xf32> to vector<8x1xf32>
    %570 = vector.broadcast %568 : vector<1x256xf32> to vector<8x256xf32>
    %571 = vector.broadcast %569 : vector<8x1xf32> to vector<8x256xf32>
    %572 = arith.mulf %570, %571 : vector<8x256xf32>
    %573 = arith.addf %567, %572 : vector<8x256xf32>
    %574 = vector.broadcast %322 : vector<8x1xf32> to vector<8x256xf32>
    %575 = arith.addf %573, %574 : vector<8x256xf32>
    %576 = vector.extract_strided_slice %575 {offsets = [0, 0], sizes = [4, 256], strides = [1, 1]} : vector<8x256xf32> to vector<4x256xf32>
    %577 = vector.extract_strided_slice %575 {offsets = [4, 0], sizes = [4, 256], strides = [1, 1]} : vector<8x256xf32> to vector<4x256xf32>
    %578 = arith.mulf %576, %577 : vector<4x256xf32>
    %579 = vector.extract_strided_slice %578 {offsets = [0, 0], sizes = [1, 256], strides = [1, 1]} : vector<4x256xf32> to vector<1x256xf32>
    %580 = vector.extract_strided_slice %7 {offsets = [0, 0], sizes = [4, 1], strides = [1, 1]} : vector<4x4xf32> to vector<4x1xf32>
    %581 = vector.broadcast %579 : vector<1x256xf32> to vector<4x256xf32>
    %582 = vector.broadcast %580 : vector<4x1xf32> to vector<4x256xf32>
    %583 = arith.mulf %581, %582 : vector<4x256xf32>
    %584 = vector.extract_strided_slice %578 {offsets = [1, 0], sizes = [1, 256], strides = [1, 1]} : vector<4x256xf32> to vector<1x256xf32>
    %585 = vector.extract_strided_slice %7 {offsets = [0, 1], sizes = [4, 1], strides = [1, 1]} : vector<4x4xf32> to vector<4x1xf32>
    %586 = vector.broadcast %584 : vector<1x256xf32> to vector<4x256xf32>
    %587 = vector.broadcast %585 : vector<4x1xf32> to vector<4x256xf32>
    %588 = arith.mulf %586, %587 : vector<4x256xf32>
    %589 = arith.addf %583, %588 : vector<4x256xf32>
    %590 = vector.extract_strided_slice %578 {offsets = [2, 0], sizes = [1, 256], strides = [1, 1]} : vector<4x256xf32> to vector<1x256xf32>
    %591 = vector.extract_strided_slice %7 {offsets = [0, 2], sizes = [4, 1], strides = [1, 1]} : vector<4x4xf32> to vector<4x1xf32>
    %592 = vector.broadcast %590 : vector<1x256xf32> to vector<4x256xf32>
    %593 = vector.broadcast %591 : vector<4x1xf32> to vector<4x256xf32>
    %594 = arith.mulf %592, %593 : vector<4x256xf32>
    %595 = arith.addf %589, %594 : vector<4x256xf32>
    %596 = vector.extract_strided_slice %578 {offsets = [3, 0], sizes = [1, 256], strides = [1, 1]} : vector<4x256xf32> to vector<1x256xf32>
    %597 = vector.extract_strided_slice %7 {offsets = [0, 3], sizes = [4, 1], strides = [1, 1]} : vector<4x4xf32> to vector<4x1xf32>
    %598 = vector.broadcast %596 : vector<1x256xf32> to vector<4x256xf32>
    %599 = vector.broadcast %597 : vector<4x1xf32> to vector<4x256xf32>
    %600 = arith.mulf %598, %599 : vector<4x256xf32>
    %601 = arith.addf %595, %600 : vector<4x256xf32>
    %602 = vector.broadcast %317 : vector<4x1xf32> to vector<4x256xf32>
    %603 = arith.addf %601, %602 : vector<4x256xf32>
    %604 = vector.broadcast %319 : vector<4x1xf32> to vector<4x256xf32>
    %605 = arith.mulf %603, %604 : vector<4x256xf32>
    %606 = arith.addf %530, %605 : vector<4x256xf32>
    %c0_90 = arith.constant 0 : index
    %c0_91 = arith.constant 0 : index
    %c0_92 = arith.constant 0 : index
    %607 = vector.load %arg12[%c0_90, %c0_91, %c0_92] : memref<1x4x256xf32, #tpu.memory_space<vmem>>, vector<1x4x256xf32>
    %608 = vector.shape_cast %607 : vector<1x4x256xf32> to vector<4x256xf32>
    %609 = vector.shape_cast %606 : vector<4x256xf32> to vector<1x4x256xf32>
    tpu.vector_store %arg12[%c0_90, %c0_91, %c0_92], %609 {strides = array<i32>} : memref<1x4x256xf32, #tpu.memory_space<vmem>>, vector<1x4x256xf32>,
    return
  }
  func.func @transform_0(%arg0: i32) -> (i32, i32, i32) {
    %c0_i32 = arith.constant 0 : i32
    %c0_i32_0 = arith.constant 0 : i32
    %c0_i32_1 = arith.constant 0 : i32
    return %arg0, %c0_i32, %c0_i32_0 : i32, i32, i32
  }
  func.func @transform_1(%arg0: i32) -> (i32, i32, i32) {
    %c0_i32 = arith.constant 0 : i32
    %c0_i32_0 = arith.constant 0 : i32
    %c0_i32_1 = arith.constant 0 : i32
    return %arg0, %c0_i32, %c0_i32_0 : i32, i32, i32
  }
  func.func @transform_2(%arg0: i32) -> (i32, i32) {
    %c0_i32 = arith.constant 0 : i32
    %c0_i32_0 = arith.constant 0 : i32
    %c0_i32_1 = arith.constant 0 : i32
    return %c0_i32, %c0_i32_0 : i32, i32
  }
  func.func @transform_3(%arg0: i32) -> (i32, i32) {
    %c0_i32 = arith.constant 0 : i32
    %c0_i32_0 = arith.constant 0 : i32
    %c0_i32_1 = arith.constant 0 : i32
    return %c0_i32, %c0_i32_0 : i32, i32
  }
  func.func @transform_4(%arg0: i32) -> (i32, i32) {
    %c0_i32 = arith.constant 0 : i32
    %c0_i32_0 = arith.constant 0 : i32
    %c0_i32_1 = arith.constant 0 : i32
    return %c0_i32, %c0_i32_0 : i32, i32
  }
  func.func @transform_5(%arg0: i32) -> (i32, i32) {
    %c0_i32 = arith.constant 0 : i32
    %c0_i32_0 = arith.constant 0 : i32
    %c0_i32_1 = arith.constant 0 : i32
    return %c0_i32, %c0_i32_0 : i32, i32
  }
  func.func @transform_6(%arg0: i32) -> (i32, i32) {
    %c0_i32 = arith.constant 0 : i32
    %c0_i32_0 = arith.constant 0 : i32
    %c0_i32_1 = arith.constant 0 : i32
    return %c0_i32, %c0_i32_0 : i32, i32
  }
  func.func @transform_7(%arg0: i32) -> (i32, i32) {
    %c0_i32 = arith.constant 0 : i32
    %c0_i32_0 = arith.constant 0 : i32
    %c0_i32_1 = arith.constant 0 : i32
    return %c0_i32, %c0_i32_0 : i32, i32
  }
  func.func @transform_8(%arg0: i32) -> (i32, i32) {
    %c0_i32 = arith.constant 0 : i32
    %c0_i32_0 = arith.constant 0 : i32
    %c0_i32_1 = arith.constant 0 : i32
    return %c0_i32, %c0_i32_0 : i32, i32
  }
  func.func @transform_9(%arg0: i32) -> (i32, i32) {
    %c0_i32 = arith.constant 0 : i32
    %c0_i32_0 = arith.constant 0 : i32
    %c0_i32_1 = arith.constant 0 : i32
    return %c0_i32, %c0_i32_0 : i32, i32
  }
  func.func @transform_10(%arg0: i32) -> (i32, i32, i32) {
    %c0_i32 = arith.constant 0 : i32
    %c0_i32_0 = arith.constant 0 : i32
    %c0_i32_1 = arith.constant 0 : i32
    return %arg0, %c0_i32, %c0_i32_0 : i32, i32, i32
  }
  func.func @transform_11(%arg0: i32) -> (i32, i32, i32) {
    %c0_i32 = arith.constant 0 : i32
    %c0_i32_0 = arith.constant 0 : i32
    %c0_i32_1 = arith.constant 0 : i32
    return %arg0, %c0_i32, %c0_i32_0 : i32, i32, i32
  }
}

</mosaic_0001>

<llo_original>
// kernel: tpu_custom_call.1
$region0: #{tpu_custom_call.1}
  #allocation0 [shape = 'u32[]', space=smem, size = 0x4, offset = 0x4, fixed_abs, tag = 'smem constant byte address 0x4 - core index']
  #allocation1 [shape = 'u32[144,128]{1,0:T(1,128)}', space=vmem, size = 0x12000, scoped, tag = 'internal scratch']
  %s0 = inlined_call_operand.vmem [shape: f32[2,4,256], index: 0, kind: input, shape index: {}]
  %s1 = inlined_call_operand.vmem [shape: f32[2,4,256], index: 1, kind: input, shape index: {}]
  %s2 = inlined_call_operand.hbm [shape: f32[4,9], index: 2, kind: input, shape index: {}]
  %s3 = inlined_call_operand.vmem [shape: f32[8,3], index: 3, kind: input, shape index: {}]
  %s4 = inlined_call_operand.vmem [shape: f32[8,9], index: 4, kind: input, shape index: {}]
  %s5 = inlined_call_operand.vmem [shape: f32[8,4], index: 5, kind: input, shape index: {}]
  %s6 = inlined_call_operand.vmem [shape: f32[4,4], index: 6, kind: input, shape index: {}]
  %s7 = inlined_call_operand.vmem [shape: f32[4,4], index: 7, kind: input, shape index: {}]
  %s8 = inlined_call_operand.vmem [shape: f32[8,4], index: 8, kind: input, shape index: {}]
  %s9 = inlined_call_operand.vmem [shape: f32[4,4], index: 9, kind: input, shape index: {}]
  %s10 = inlined_call_operand.hbm [shape: f32[2,4,256], index: 10, kind: output, shape index: {0}]
  %s11 = inlined_call_operand.hbm [shape: f32[2,4,256], index: 11, kind: output, shape index: {1}]
  %12 = xla_tuple %s10, %s11
  %s13 = sld [smem:[#allocation0]]
  $region85: #{tpu_custom_call.1} parent=0
    _
  %s15 = ssub.s32 1, %s13
  %s16 = scalar_select 0, %s15, %s13
  $region1: #{tpu_custom_call.1} parent=0
    #allocation2 [shape = 'u8[2048]{0}', space=vmem, size = 0x800, scoped, tag = 'input window, operand 2, single buffered']
    #allocation3 [shape = 's32[2]{0}', space=sflag, size = 0x8, scoped, tag = 'scoped memory for tpu_custom_call.1']
    #allocation4 [shape = 's32[2]{0}', space=sflag, size = 0x8, scoped, tag = 'scoped memory for tpu_custom_call.1']
    #allocation5 [shape = 'u8[8192]{0}', space=vmem, size = 0x2000, scoped, tag = 'output window, operand 0']
    #allocation6 [shape = 'u8[8192]{0}', space=vmem, size = 0x2000, scoped, tag = 'output window, operand 1']
    #allocation7 [shape = 's32[2]{0}', space=sflag, size = 0x8, scoped, tag = 'scoped memory for tpu_custom_call.1']
    %17 = vsyncpa [#allocation3], 0
    %18 = vsyncpa [#allocation4], 0
    %s19 = scalar_lea.sflag [#allocation4], 1
    %20 = vsyncpa %s19, 0
    %21 = vsyncpa [#allocation7], 0
    %s22 = scalar_lea.sflag [#allocation7], 1
    %23 = vsyncpa %s22, 0
    loop: start=0, step=1, limit=4
    $region2: #{tpu_custom_call.1} parent=1 // loop_pre_header
      _
    $region3: #{tpu_custom_call.1} parent=1 // loop_header
      %s25 = sphi 0, %s29
      %p26 = scmp.ge.s32.totalorder %s25, 4
      %s35 = sphi 0, %s37
      %s38 = sphi 0, %s35
      %s39 = sphi 0, %s38
      %s55 = sphi 0, %s39
      %s61 = sphi 0, %s63
      %s64 = sphi 0, %s61
      %s65 = sphi 0, %s64
      %s81 = sphi 0, %s65
      %s85 = sphi 0, %s85
      %s87 = sphi 0, %s85
      %s88 = sphi 0, %s87
      %s102 = sphi 0, %s88
      %s106 = sphi 0, %s106
      %s108 = sphi 0, %s106
      %s109 = sphi 0, %s108
      %s123 = sphi 0, %s109
      %s127 = sphi 0, %s127
      %s129 = sphi 0, %s127
      %s130 = sphi 0, %s129
      %s144 = sphi 0, %s130
      %s148 = sphi 0, %s148
      %s150 = sphi 0, %s148
      %s151 = sphi 0, %s150
      %s165 = sphi 0, %s151
      %s169 = sphi 0, %s169
      %s171 = sphi 0, %s169
      %s172 = sphi 0, %s171
      %s186 = sphi 0, %s172
      %s190 = sphi 0, %s190
      %s192 = sphi 0, %s190
      %s193 = sphi 0, %s192
      %s207 = sphi 0, %s193
      %s211 = sphi 0, %s211
      %s213 = sphi 0, %s211
      %s214 = sphi 0, %s213
      %s228 = sphi 0, %s214
      %s232 = sphi 0, %s232
      %s234 = sphi 0, %s232
      %s235 = sphi 0, %s234
      %s249 = sphi 0, %s235
      %s255 = sphi 0, %s257
      %s258 = sphi 0, %s255
      %s259 = sphi 0, %s258
      %s275 = sphi 0, %s259
      %s281 = sphi 0, %s283
      %s284 = sphi 0, %s281
      %s285 = sphi 0, %s284
      %s301 = sphi 0, %s285
    $region4: #{tpu_custom_call.1} parent=1 // loop_header_branch
      %28 = sbr.rel (%p26) target = $region8
    $region5: #{tpu_custom_call.1} parent=1 // loop_body
      %s30 = ssub.s32 %s25, 1
      %s31 = ssub.s32 %s25, 2
      %s32 = sadd.s32 %s25, 1
      %s33 = ssub.s32 %s25, %s32
      %p34 = scmp.eq.s32.totalorder %s33, 0
      %s36 = sadd.s32 %s35, 1
      %s37 = scalar_select %p34, %s35, %s36
      %p40 = pneg %p34
      %p41 = scmp.eq.s32.totalorder %s25, 1
      %p42 = por %p40, %p41
      %p43 = scmp.ne.s32.totalorder %s35, %s38
      %p44 = scmp.eq.s32.totalorder %s25, 0
      %p45 = por %p43, %p44
      %p46 = scmp.ne.s32.totalorder %s35, %s38
      %p47 = scmp.eq.s32.totalorder %s30, 1
      %p48 = por %p46, %p47
      %p49 = scmp.ne.s32.totalorder %s38, %s39
      %p50 = scmp.eq.s32.totalorder %s30, 0
      %p51 = por %p49, %p50
      %p52 = scmp.ne.s32.totalorder %s38, %s39
      %p53 = scmp.eq.s32.totalorder %s31, 1
      %p54 = por %p52, %p53
      %p56 = scmp.ne.s32.totalorder %s39, %s55
      %p57 = scmp.eq.s32.totalorder %s31, 0
      %p58 = por %p56, %p57
      %s59 = ssub.s32 %s25, %s32
      %p60 = scmp.eq.s32.totalorder %s59, 0
      %s62 = sadd.s32 %s61, 1
      %s63 = scalar_select %p60, %s61, %s62
      %p66 = pneg %p60
      %p67 = scmp.eq.s32.totalorder %s25, 1
      %p68 = por %p66, %p67
      %p69 = scmp.ne.s32.totalorder %s61, %s64
      %p70 = scmp.eq.s32.totalorder %s25, 0
      %p71 = por %p69, %p70
      %p72 = scmp.ne.s32.totalorder %s61, %s64
      %p73 = scmp.eq.s32.totalorder %s30, 1
      %p74 = por %p72, %p73
      %p75 = scmp.ne.s32.totalorder %s64, %s65
      %p76 = scmp.eq.s32.totalorder %s30, 0
      %p77 = por %p75, %p76
      %p78 = scmp.ne.s32.totalorder %s64, %s65
      %p79 = scmp.eq.s32.totalorder %s31, 1
      %p80 = por %p78, %p79
      %p82 = scmp.ne.s32.totalorder %s65, %s81
      %p83 = scmp.eq.s32.totalorder %s31, 0
      %p84 = por %p82, %p83
      %s86 = sadd.s32 %s85, 1
      %p89 = scmp.eq.s32.totalorder %s25, 1
      %p90 = scmp.ne.s32.totalorder %s85, %s87
      %p91 = scmp.eq.s32.totalorder %s25, 0
      %p92 = por %p90, %p91
      %p93 = scmp.ne.s32.totalorder %s85, %s87
      %p94 = scmp.eq.s32.totalorder %s30, 1
      %p95 = por %p93, %p94
      %p96 = scmp.ne.s32.totalorder %s87, %s88
      %p97 = scmp.eq.s32.totalorder %s30, 0
      %p98 = por %p96, %p97
      %p99 = scmp.ne.s32.totalorder %s87, %s88
      %p100 = scmp.eq.s32.totalorder %s31, 1
      %p101 = por %p99, %p100
      %p103 = scmp.ne.s32.totalorder %s88, %s102
      %p104 = scmp.eq.s32.totalorder %s31, 0
      %p105 = por %p103, %p104
      %s107 = sadd.s32 %s106, 1
      %p110 = scmp.eq.s32.totalorder %s25, 1
      %p111 = scmp.ne.s32.totalorder %s106, %s108
      %p112 = scmp.eq.s32.totalorder %s25, 0
      %p113 = por %p111, %p112
      %p114 = scmp.ne.s32.totalorder %s106, %s108
      %p115 = scmp.eq.s32.totalorder %s30, 1
      %p116 = por %p114, %p115
      %p117 = scmp.ne.s32.totalorder %s108, %s109
      %p118 = scmp.eq.s32.totalorder %s30, 0
      %p119 = por %p117, %p118
      %p120 = scmp.ne.s32.totalorder %s108, %s109
      %p121 = scmp.eq.s32.totalorder %s31, 1
      %p122 = por %p120, %p121
      %p124 = scmp.ne.s32.totalorder %s109, %s123
      %p125 = scmp.eq.s32.totalorder %s31, 0
      %p126 = por %p124, %p125
      %s128 = sadd.s32 %s127, 1
      %p131 = scmp.eq.s32.totalorder %s25, 1
      %p132 = scmp.ne.s32.totalorder %s127, %s129
      %p133 = scmp.eq.s32.totalorder %s25, 0
      %p134 = por %p132, %p133
      %p135 = scmp.ne.s32.totalorder %s127, %s129
      %p136 = scmp.eq.s32.totalorder %s30, 1
      %p137 = por %p135, %p136
      %p138 = scmp.ne.s32.totalorder %s129, %s130
      %p139 = scmp.eq.s32.totalorder %s30, 0
      %p140 = por %p138, %p139
      %p141 = scmp.ne.s32.totalorder %s129, %s130
      %p142 = scmp.eq.s32.totalorder %s31, 1
      %p143 = por %p141, %p142
      %p145 = scmp.ne.s32.totalorder %s130, %s144
      %p146 = scmp.eq.s32.totalorder %s31, 0
      %p147 = por %p145, %p146
      %s149 = sadd.s32 %s148, 1
      %p152 = scmp.eq.s32.totalorder %s25, 1
      %p153 = scmp.ne.s32.totalorder %s148, %s150
      %p154 = scmp.eq.s32.totalorder %s25, 0
      %p155 = por %p153, %p154
      %p156 = scmp.ne.s32.totalorder %s148, %s150
      %p157 = scmp.eq.s32.totalorder %s30, 1
      %p158 = por %p156, %p157
      %p159 = scmp.ne.s32.totalorder %s150, %s151
      %p160 = scmp.eq.s32.totalorder %s30, 0
      %p161 = por %p159, %p160
      %p162 = scmp.ne.s32.totalorder %s150, %s151
      %p163 = scmp.eq.s32.totalorder %s31, 1
      %p164 = por %p162, %p163
      %p166 = scmp.ne.s32.totalorder %s151, %s165
      %p167 = scmp.eq.s32.totalorder %s31, 0
      %p168 = por %p166, %p167
      %s170 = sadd.s32 %s169, 1
      %p173 = scmp.eq.s32.totalorder %s25, 1
      %p174 = scmp.ne.s32.totalorder %s169, %s171
      %p175 = scmp.eq.s32.totalorder %s25, 0
      %p176 = por %p174, %p175
      %p177 = scmp.ne.s32.totalorder %s169, %s171
      %p178 = scmp.eq.s32.totalorder %s30, 1
      %p179 = por %p177, %p178
      %p180 = scmp.ne.s32.totalorder %s171, %s172
      %p181 = scmp.eq.s32.totalorder %s30, 0
      %p182 = por %p180, %p181
      %p183 = scmp.ne.s32.totalorder %s171, %s172
      %p184 = scmp.eq.s32.totalorder %s31, 1
      %p185 = por %p183, %p184
      %p187 = scmp.ne.s32.totalorder %s172, %s186
      %p188 = scmp.eq.s32.totalorder %s31, 0
      %p189 = por %p187, %p188
      %s191 = sadd.s32 %s190, 1
      %p194 = scmp.eq.s32.totalorder %s25, 1
      %p195 = scmp.ne.s32.totalorder %s190, %s192
      %p196 = scmp.eq.s32.totalorder %s25, 0
      %p197 = por %p195, %p196
      %p198 = scmp.ne.s32.totalorder %s190, %s192
      %p199 = scmp.eq.s32.totalorder %s30, 1
      %p200 = por %p198, %p199
      %p201 = scmp.ne.s32.totalorder %s192, %s193
      %p202 = scmp.eq.s32.totalorder %s30, 0
      %p203 = por %p201, %p202
      %p204 = scmp.ne.s32.totalorder %s192, %s193
      %p205 = scmp.eq.s32.totalorder %s31, 1
      %p206 = por %p204, %p205
      %p208 = scmp.ne.s32.totalorder %s193, %s207
      %p209 = scmp.eq.s32.totalorder %s31, 0
      %p210 = por %p208, %p209
      %s212 = sadd.s32 %s211, 1
      %p215 = scmp.eq.s32.totalorder %s25, 1
      %p216 = scmp.ne.s32.totalorder %s211, %s213
      %p217 = scmp.eq.s32.totalorder %s25, 0
      %p218 = por %p216, %p217
      %p219 = scmp.ne.s32.totalorder %s211, %s213
      %p220 = scmp.eq.s32.totalorder %s30, 1
      %p221 = por %p219, %p220
      %p222 = scmp.ne.s32.totalorder %s213, %s214
      %p223 = scmp.eq.s32.totalorder %s30, 0
      %p224 = por %p222, %p223
      %p225 = scmp.ne.s32.totalorder %s213, %s214
      %p226 = scmp.eq.s32.totalorder %s31, 1
      %p227 = por %p225, %p226
      %p229 = scmp.ne.s32.totalorder %s214, %s228
      %p230 = scmp.eq.s32.totalorder %s31, 0
      %p231 = por %p229, %p230
      %s233 = sadd.s32 %s232, 1
      %p236 = scmp.eq.s32.totalorder %s25, 1
      %p237 = scmp.ne.s32.totalorder %s232, %s234
      %p238 = scmp.eq.s32.totalorder %s25, 0
      %p239 = por %p237, %p238
      %p240 = scmp.ne.s32.totalorder %s232, %s234
      %p241 = scmp.eq.s32.totalorder %s30, 1
      %p242 = por %p240, %p241
      %p243 = scmp.ne.s32.totalorder %s234, %s235
      %p244 = scmp.eq.s32.totalorder %s30, 0
      %p245 = por %p243, %p244
      %p246 = scmp.ne.s32.totalorder %s234, %s235
      %p247 = scmp.eq.s32.totalorder %s31, 1
      %p248 = por %p246, %p247
      %p250 = scmp.ne.s32.totalorder %s235, %s249
      %p251 = scmp.eq.s32.totalorder %s31, 0
      %p252 = por %p250, %p251
      %s253 = ssub.s32 %s25, %s32
      %p254 = scmp.eq.s32.totalorder %s253, 0
      %s256 = sadd.s32 %s255, 1
      %s257 = scalar_select %p254, %s255, %s256
      %p260 = pneg %p254
      %p261 = scmp.eq.s32.totalorder %s25, 1
      %p262 = por %p260, %p261
      %p263 = scmp.ne.s32.totalorder %s255, %s258
      %p264 = scmp.eq.s32.totalorder %s25, 0
      %p265 = por %p263, %p264
      %p266 = scmp.ne.s32.totalorder %s255, %s258
      %p267 = scmp.eq.s32.totalorder %s30, 1
      %p268 = por %p266, %p267
      %p269 = scmp.ne.s32.totalorder %s258, %s259
      %p270 = scmp.eq.s32.totalorder %s30, 0
      %p271 = por %p269, %p270
      %p272 = scmp.ne.s32.totalorder %s258, %s259
      %p273 = scmp.eq.s32.totalorder %s31, 1
      %p274 = por %p272, %p273
      %p276 = scmp.ne.s32.totalorder %s259, %s275
      %p277 = scmp.eq.s32.totalorder %s31, 0
      %p278 = por %p276, %p277
      %s279 = ssub.s32 %s25, %s32
      %p280 = scmp.eq.s32.totalorder %s279, 0
      %s282 = sadd.s32 %s281, 1
      %s283 = scalar_select %p280, %s281, %s282
      %p286 = pneg %p280
      %p287 = scmp.eq.s32.totalorder %s25, 1
      %p288 = por %p286, %p287
      %p289 = scmp.ne.s32.totalorder %s281, %s284
      %p290 = scmp.eq.s32.totalorder %s25, 0
      %p291 = por %p289, %p290
      %p292 = scmp.ne.s32.totalorder %s281, %s284
      %p293 = scmp.eq.s32.totalorder %s30, 1
      %p294 = por %p292, %p293
      %p295 = scmp.ne.s32.totalorder %s284, %s285
      %p296 = scmp.eq.s32.totalorder %s30, 0
      %p297 = por %p295, %p296
      %p298 = scmp.ne.s32.totalorder %s284, %s285
      %p299 = scmp.eq.s32.totalorder %s31, 1
      %p300 = por %p298, %p299
      %p302 = scmp.ne.s32.totalorder %s285, %s301
      %p303 = scmp.eq.s32.totalorder %s31, 0
      %p304 = por %p302, %p303
      %p305 = scmp.le.s32.totalorder 1, %s25
      %p306 = scmp.lt.s32.totalorder %s25, 3
      %p307 = pnand %p305, %p306
      %p308 = pneg %p307
      // Predicated region
      $region9: #{tpu_custom_call.1} parent=5 // pred_check
        _
      $region10: #{tpu_custom_call.1} parent=5 // pred_check_branch
        %310 = sbr.rel (%p307) target = $region12
      $region11: #{tpu_custom_call.1} parent=5 // pred_region
        %s311 = ssub.s32 %s25, 1
        // Predicated region
        $region13: #{tpu_custom_call.1} parent=11 // pred_check
          %p312 = pneg %p98
        $region14: #{tpu_custom_call.1} parent=11 // pred_check_branch
          %314 = sbr.rel (%p312) target = $region16
        $region15: #{tpu_custom_call.1} parent=11 // pred_region
          %s316 = ssub.s32 64, 64
          %317 = vsyncadd [#allocation3], %s316
          %s319 = sshll.u32 [#allocation2], 4
          %s320 = int_to_ptr.vmem [resolvable:$true] %s319
          %322 = dma.hbm_to_vmem [thread:$0]  %s2, 64, %s320, [#allocation3]
        $region16: #{tpu_custom_call.1} parent=11 // pred_fallthru
          _
        // Predicated region
        $region17: #{tpu_custom_call.1} parent=11 // pred_check
          %p323 = pneg %p119
        $region18: #{tpu_custom_call.1} parent=11 // pred_check_branch
          %325 = sbr.rel (%p323) target = $region20
        $region19: #{tpu_custom_call.1} parent=11 // pred_region
          _
        $region20: #{tpu_custom_call.1} parent=11 // pred_fallthru
          _
        // Predicated region
        $region21: #{tpu_custom_call.1} parent=11 // pred_check
          %p326 = pneg %p140
        $region22: #{tpu_custom_call.1} parent=11 // pred_check_branch
          %328 = sbr.rel (%p326) target = $region24
        $region23: #{tpu_custom_call.1} parent=11 // pred_region
          _
        $region24: #{tpu_custom_call.1} parent=11 // pred_fallthru
          _
        // Predicated region
        $region25: #{tpu_custom_call.1} parent=11 // pred_check
          %p329 = pneg %p161
        $region26: #{tpu_custom_call.1} parent=11 // pred_check_branch
          %331 = sbr.rel (%p329) target = $region28
        $region27: #{tpu_custom_call.1} parent=11 // pred_region
          _
        $region28: #{tpu_custom_call.1} parent=11 // pred_fallthru
          _
        // Predicated region
        $region29: #{tpu_custom_call.1} parent=11 // pred_check
          %p332 = pneg %p182
        $region30: #{tpu_custom_call.1} parent=11 // pred_check_branch
          %334 = sbr.rel (%p332) target = $region32
        $region31: #{tpu_custom_call.1} parent=11 // pred_region
          _
        $region32: #{tpu_custom_call.1} parent=11 // pred_fallthru
          _
        // Predicated region
        $region33: #{tpu_custom_call.1} parent=11 // pred_check
          %p335 = pneg %p203
        $region34: #{tpu_custom_call.1} parent=11 // pred_check_branch
          %337 = sbr.rel (%p335) target = $region36
        $region35: #{tpu_custom_call.1} parent=11 // pred_region
          _
        $region36: #{tpu_custom_call.1} parent=11 // pred_fallthru
          _
        // Predicated region
        $region37: #{tpu_custom_call.1} parent=11 // pred_check
          %p338 = pneg %p224
        $region38: #{tpu_custom_call.1} parent=11 // pred_check_branch
          %340 = sbr.rel (%p338) target = $region40
        $region39: #{tpu_custom_call.1} parent=11 // pred_region
          _
        $region40: #{tpu_custom_call.1} parent=11 // pred_fallthru
          _
        // Predicated region
        $region41: #{tpu_custom_call.1} parent=11 // pred_check
          %p341 = pneg %p245
        $region42: #{tpu_custom_call.1} parent=11 // pred_check_branch
          %343 = sbr.rel (%p341) target = $region44
        $region43: #{tpu_custom_call.1} parent=11 // pred_region
          _
        $region44: #{tpu_custom_call.1} parent=11 // pred_fallthru
          _
      $region12: #{tpu_custom_call.1} parent=5 // pred_fallthru
        _
      %p344 = scmp.lt.s32.totalorder %s25, 2
      // Predicated region
      $region45: #{tpu_custom_call.1} parent=5 // pred_check
        %p345 = pneg %p344
      $region46: #{tpu_custom_call.1} parent=5 // pred_check_branch
        %347 = sbr.rel (%p345) target = $region48
      $region47: #{tpu_custom_call.1} parent=5 // pred_region
        // Predicated region
        $region49: #{tpu_custom_call.1} parent=47 // pred_check
          %p348 = pneg %p45
        $region50: #{tpu_custom_call.1} parent=47 // pred_check_branch
          %350 = sbr.rel (%p348) target = $region52
        $region51: #{tpu_custom_call.1} parent=47 // pred_region
          %p351 = scmp.lt.s32.totalorder %s25, 1
          %s352 = scalar_select %p351, %s25, 1
          %s353 = smul.addr %s352, 2
          %s354 = smul.addr %s353, 4
          %s355 = scalar_lea.vmem %s0, %s354
        $region52: #{tpu_custom_call.1} parent=47 // pred_fallthru
          _
        // Predicated region
        $region53: #{tpu_custom_call.1} parent=47 // pred_check
          %p356 = pneg %p71
        $region54: #{tpu_custom_call.1} parent=47 // pred_check_branch
          %358 = sbr.rel (%p356) target = $region56
        $region55: #{tpu_custom_call.1} parent=47 // pred_region
          %p359 = scmp.lt.s32.totalorder %s25, 1
          %s360 = scalar_select %p359, %s25, 1
          %s361 = smul.addr %s360, 2
          %s362 = smul.addr %s361, 4
          %s363 = scalar_lea.vmem %s1, %s362
        $region56: #{tpu_custom_call.1} parent=47 // pred_fallthru
          _
      $region48: #{tpu_custom_call.1} parent=5 // pred_fallthru
        _
      %p364 = scmp.le.s32.totalorder 1, %s25
      %p365 = scmp.lt.s32.totalorder %s25, 3
      %p366 = pnand %p364, %p365
      %p367 = pneg %p366
      // Predicated region
      $region57: #{tpu_custom_call.1} parent=5 // pred_check
        _
      $region58: #{tpu_custom_call.1} parent=5 // pred_check_branch
        %369 = sbr.rel (%p366) target = $region60
      $region59: #{tpu_custom_call.1} parent=5 // pred_region
        %s370 = ssub.s32 %s25, 1
        // Predicated region
        $region61: #{tpu_custom_call.1} parent=59 // pred_check
          %p371 = pneg %p98
        $region62: #{tpu_custom_call.1} parent=59 // pred_check_branch
          %373 = sbr.rel (%p371) target = $region64
        $region63: #{tpu_custom_call.1} parent=59 // pred_region
          %374 = dma.done [#allocation3], 64
        $region64: #{tpu_custom_call.1} parent=59 // pred_fallthru
          _
        %p375 = scmp.lt.s32.totalorder %s30, 1
        %s376 = scalar_select %p375, %s30, 1
        %s377 = smul.addr %s376, 2
        %s378 = smul.addr %s377, 4
        %s379 = scalar_lea.vmem %s0, %s378
        %p380 = pneg %p51
        %p381 = pneg %p48
        %p382 = scmp.lt.s32.totalorder %s30, 1
        %s383 = scalar_select %p382, %s30, 1
        %s384 = smul.addr %s383, 2
        %s385 = smul.addr %s384, 4
        %s386 = scalar_lea.vmem %s1, %s385
        %p387 = pneg %p77
        %p388 = pneg %p74
        %p389 = pneg %p98
        %p390 = pneg %p95
        %p391 = pneg %p119
        %p392 = pneg %p116
        %p393 = pneg %p140
        %p394 = pneg %p137
        %p395 = pneg %p161
        %p396 = pneg %p158
        %p397 = pneg %p182
        %p398 = pneg %p179
        %p399 = pneg %p203
        %p400 = pneg %p200
        %p401 = pneg %p224
        %p402 = pneg %p221
        %p403 = pneg %p245
        %p404 = pneg %p242
        %p405 = pneg %p271
        %p406 = pneg %p268
        %s407 = sand.u32 %s258, 1
        %s408 = scalar_lea.sflag [#allocation4], %s407
        %s409 = sand.u32 %s258, 1
        %s410 = smul.addr %s409, 8
        %s411 = scalar_lea.vmem [#allocation5], %s410
        %p412 = pneg %p297
        %p413 = pneg %p294
        %s414 = sand.u32 %s284, 1
        %s415 = scalar_lea.sflag [#allocation7], %s414
        %s416 = sand.u32 %s284, 1
        %s417 = smul.addr %s416, 8
        %s418 = scalar_lea.vmem [#allocation6], %s417
        %p419 = scmp.lt.s32.totalorder %s30, 1
        %s420 = scalar_select %p419, %s30, 1
        %s421 = smul.addr %s420, 2
        %s422 = smul.addr %s421, 4
        %s423 = scalar_lea.vmem %s0, %s422
        %p424 = scmp.lt.s32.totalorder %s30, 1
        %s425 = scalar_select %p424, %s30, 1
        %s426 = smul.addr %s425, 2
        %s427 = smul.addr %s426, 4
        %s428 = scalar_lea.vmem %s1, %s427
        %v429 = vld [vmem:[#allocation2] sm:$0xf]
        %v430 = vld [vmem:[%s3] sm:$0xff]
        %v431 = vld [vmem:[%s4] sm:$0xff]
        %v432 = vld [vmem:[%s5] sm:$0xff]
        %v433 = vld [vmem:[%s6] sm:$0xf]
        %v434 = vld [vmem:[%s7] sm:$0xf]
        %v435 = vld [vmem:[%s8] sm:$0xff]
        %v436 = vld [vmem:[%s9] sm:$0xf]
        %v437 = vld [vmem:[%s423] sm:$0xff]
        %v439 = vcombine.high %v437, %v437
        %vm441 = vcmask 1043456
        %v442 = vsel %vm441, %v437, 0.0
        %v443 = vrot.slane %v442, 4
        %v444 = vadd.f32 %v442, %v443
        %v445 = vrot.slane %v444, 2
        %v446 = vadd.f32 %v444, %v445
        %v447 = vrot.slane %v446, 1
        %v448 = vadd.f32 %v446, %v447
        %v449 = vsel %vm441, %v439, 0.0
        %v450 = vrot.slane %v449, 4
        %v451 = vadd.f32 %v449, %v450
        %v452 = vrot.slane %v451, 2
        %v453 = vadd.f32 %v451, %v452
        %v454 = vrot.slane %v453, 1
        %v455 = vadd.f32 %v453, %v454
        %v456 = vrcp.pop 4.0
        %v457 = vmul.f32 %v448, %v456
        %v458 = vmul.f32 %v455, %v456
        %v461 = vcombine.low %v457, %v458
        %v463 = vsub.f32 %v437, %v461
        %v464 = vmul.f32 %v463, %v463
        %v466 = vcombine.high %v464, %v464
        %v468 = vsel %vm441, %v464, 0.0
        %v469 = vrot.slane %v468, 4
        %v470 = vadd.f32 %v468, %v469
        %v471 = vrot.slane %v470, 2
        %v472 = vadd.f32 %v470, %v471
        %v473 = vrot.slane %v472, 1
        %v474 = vadd.f32 %v472, %v473
        %v475 = vsel %vm441, %v466, 0.0
        %v476 = vrot.slane %v475, 4
        %v477 = vadd.f32 %v475, %v476
        %v478 = vrot.slane %v477, 2
        %v479 = vadd.f32 %v477, %v478
        %v480 = vrot.slane %v479, 1
        %v481 = vadd.f32 %v479, %v480
        %v482 = vmul.f32 %v474, %v456
        %v483 = vmul.f32 %v481, %v456
        %v484 = vadd.f32 %v482, 1e-06
        %v485 = vadd.f32 %v483, 1e-06
        %v486 = vrsqrt.pop %v484
        %v487 = vrsqrt.pop %v485
        %v490 = vcombine.low %v486, %v487
        %v492 = vmul.f32 %v463, %v490
        %494 = vset.pattern.permute.xlu0 0
        %495 = vperm.xlu0 %494, %v429
        %v496 = vpop.permute.xlu0 %495
        %v498 = vunpack.c.l.s4 839922192
        %v499 = vunpack.c.0.s8 %v498
        %v500 = vlaneseq
        %v501 = vshrl.u32 %v500, 7
        %v502 = vsub.s32 %v499, %v501
        %v503 = vrot.slane %v496, %v502
        %v505 = vmul.f32 %v492, %v503
        %506 = vset.pattern.permute.xlu0 1
        %507 = vperm.xlu0 %506, %v429
        %v508 = vpop.permute.xlu0 %507
        %v510 = vunpack.c.l.s4 839922192
        %v511 = vunpack.c.0.s8 %v510
        %v512 = vlaneseq
        %v513 = vshrl.u32 %v512, 7
        %v514 = vsub.s32 %v511, %v513
        %v515 = vrot.slane %v508, %v514
        %v517 = vadd.f32 %v505, %v515
        %v519 = vlaneseq
        %v520 = vshrl.u32 %v519, 7
        %v521 = vsub.s32 0, %v520
        %v522 = vrot.slane %v517, %v521
        %v523 = vlaneseq
        %v524 = vshrl.u32 %v523, 7
        %v525 = vsub.s32 4, %v524
        %v526 = vrot.slane %v517, %v525
        %v529 = vlaneseq
        %v530 = vshrl.u32 %v529, 7
        %v531 = vsub.s32 0, %v530
        %v532 = vrot.slane %v522, %v531
        %v533 = vlaneseq
        %v534 = vshrl.u32 %v533, 7
        %v535 = vsub.s32 0, %v534
        %v536 = vrot.slane %v526, %v535
        %538 = vset.pattern.permute.xlu0 0
        %539 = vperm.xlu0 %538, %v432
        %v540 = vpop.permute.xlu0 %539
        %v542 = vmul.f32 %v532, %v540
        %v543 = vmul.f32 %v536, %v540
        %v544 = vlaneseq
        %v545 = vshrl.u32 %v544, 7
        %v546 = vsub.s32 1, %v545
        %v547 = vrot.slane %v517, %v546
        %v548 = vlaneseq
        %v549 = vshrl.u32 %v548, 7
        %v550 = vsub.s32 5, %v549
        %v551 = vrot.slane %v517, %v550
        %v554 = vlaneseq
        %v555 = vshrl.u32 %v554, 7
        %v556 = vsub.s32 1, %v555
        %v557 = vrot.slane %v547, %v556
        %v558 = vlaneseq
        %v559 = vshrl.u32 %v558, 7
        %v560 = vsub.s32 1, %v559
        %v561 = vrot.slane %v551, %v560
        %562 = vset.pattern.permute.xlu0 1
        %563 = vperm.xlu0 %562, %v432
        %v564 = vpop.permute.xlu0 %563
        %v566 = vmul.f32 %v557, %v564
        %v567 = vmul.f32 %v561, %v564
        %v568 = vadd.f32 %v542, %v566
        %v569 = vadd.f32 %v543, %v567
        %v570 = vlaneseq
        %v571 = vshrl.u32 %v570, 7
        %v572 = vsub.s32 2, %v571
        %v573 = vrot.slane %v517, %v572
        %v574 = vlaneseq
        %v575 = vshrl.u32 %v574, 7
        %v576 = vsub.s32 6, %v575
        %v577 = vrot.slane %v517, %v576
        %v580 = vlaneseq
        %v581 = vshrl.u32 %v580, 7
        %v582 = vsub.s32 2, %v581
        %v583 = vrot.slane %v573, %v582
        %v584 = vlaneseq
        %v585 = vshrl.u32 %v584, 7
        %v586 = vsub.s32 2, %v585
        %v587 = vrot.slane %v577, %v586
        %588 = vset.pattern.permute.xlu0 2
        %589 = vperm.xlu0 %588, %v432
        %v590 = vpop.permute.xlu0 %589
        %v592 = vmul.f32 %v583, %v590
        %v593 = vmul.f32 %v587, %v590
        %v594 = vadd.f32 %v568, %v592
        %v595 = vadd.f32 %v569, %v593
        %v596 = vlaneseq
        %v597 = vshrl.u32 %v596, 7
        %v598 = vsub.s32 3, %v597
        %v599 = vrot.slane %v517, %v598
        %v600 = vlaneseq
        %v601 = vshrl.u32 %v600, 7
        %v602 = vsub.s32 7, %v601
        %v603 = vrot.slane %v517, %v602
        %v606 = vlaneseq
        %v607 = vshrl.u32 %v606, 7
        %v608 = vsub.s32 3, %v607
        %v609 = vrot.slane %v599, %v608
        %v610 = vlaneseq
        %v611 = vshrl.u32 %v610, 7
        %v612 = vsub.s32 3, %v611
        %v613 = vrot.slane %v603, %v612
        %614 = vset.pattern.permute.xlu0 3
        %615 = vperm.xlu0 %614, %v432
        %v616 = vpop.permute.xlu0 %615
        %v618 = vmul.f32 %v609, %v616
        %v619 = vmul.f32 %v613, %v616
        %v620 = vadd.f32 %v594, %v618
        %v621 = vadd.f32 %v595, %v619
        %623 = vset.pattern.permute.xlu0 0
        %624 = vperm.xlu0 %623, %v430
        %v625 = vpop.permute.xlu0 %624
        %v627 = vadd.f32 %v620, %v625
        %v628 = vadd.f32 %v621, %v625
        %v629 = vlaneseq
        %v630 = vand.u32 %v629, 127
        %v631 = vadd.s32 %v630, 128
        %vm632 = vcmp.lt.s32.totalorder %v630, 0
        %v633 = vsub.s32 0, %v630
        %v634 = vsel %vm632, %v633, %v630
        %v635 = vshrl.u32 %v634, 4
        %v636 = vand.u32 %v634, 15
        %v637 = vsub.s32 0, %v636
        %v638 = vsel %vm632, %v637, %v636
        %vm639 = vcmp.lt.s32.totalorder %v631, 0
        %v640 = vsub.s32 0, %v631
        %v641 = vsel %vm639, %v640, %v631
        %v642 = vshrl.u32 %v641, 4
        %v643 = vand.u32 %v641, 15
        %v644 = vsub.s32 0, %v643
        %v645 = vsel %vm639, %v644, %v643
        %vm646 = vcmp.ne.s32.totalorder %v638, 0
        %vm647 = vcmp.ne.s32.totalorder %v645, 0
        %vm648 = vcmp.lt.s32.totalorder %v638, 0
        %vm649 = vcmp.lt.s32.totalorder %v645, 0
        %vm650 = vmand %vm648, %vm646
        %vm651 = vmand %vm649, %vm647
        %v652 = vadd.s32 %v638, 16
        %v653 = vadd.s32 %v645, 16
        %v654 = vsel %vm650, %v652, %v638
        %v655 = vsel %vm651, %v653, %v645
        %vm656 = vcmp.ge.s32.totalorder %v630, 16
        %vm657 = vcmp.ge.s32.totalorder %v631, 16
        %vm658 = vcmp.lt.s32.totalorder %v630, 240
        %vm659 = vcmp.lt.s32.totalorder %v631, 240
        %vm660 = vcmp.gt.s32.totalorder %v654, 0
        %vm661 = vcmp.gt.s32.totalorder %v655, 0
        %vm662 = vcmp.lt.s32.totalorder %v654, 15
        %vm663 = vcmp.lt.s32.totalorder %v655, 15
        %665 = vset.pattern.permute.xlu0 4
        %666 = vperm.xlu0 %665, %v431
        %v667 = vpop.permute.xlu0 %666
        %v669 = vmul.f32 %v627, %v667
        %v670 = vmul.f32 %v628, %v667
        %671 = vset.pattern.permute.xlu0 1
        %672 = vperm.xlu0 %671, %v430
        %v673 = vpop.permute.xlu0 %672
        %v675 = vadd.f32 %v669, %v673
        %v676 = vadd.f32 %v670, %v673
        %677 = vrot.lane.b32.xlu0 %v627, 17
        %v678 = vpop.permute.xlu0 %677
        %679 = vrot.lane.b32.xlu0 %v628, 17
        %v680 = vpop.permute.xlu0 %679
        %vm681 = vcmp.lt.s32.totalorder %v630, 17
        %v682 = vsel %vm681, %v678, %v680
        %v683 = vsel %vm681, %v680, %v678
        %vm684 = vmand %vm656, %vm660
        %vm685 = vmand %vm657, %vm661
        %v686 = vsel %vm684, 1, 0
        %v687 = vsel %vm685, 1, 0
        %vm688 = vcmp.eq.s32.totalorder %v686, 1
        %vm689 = vcmp.eq.s32.totalorder %v687, 1
        %v690 = vsel %vm688, %v683, 0.0
        %v691 = vsel %vm689, %v682, 0.0
        %692 = vset.pattern.permute.xlu0 0
        %693 = vperm.xlu0 %692, %v431
        %v694 = vpop.permute.xlu0 %693
        %v696 = vmul.f32 %v690, %v694
        %v697 = vmul.f32 %v691, %v694
        %v698 = vadd.f32 %v675, %v696
        %v699 = vadd.f32 %v676, %v697
        %700 = vrot.lane.b32.xlu0 %v627, 16
        %v701 = vpop.permute.xlu0 %700
        %702 = vrot.lane.b32.xlu0 %v628, 16
        %v703 = vpop.permute.xlu0 %702
        %vm704 = vcmp.lt.s32.totalorder %v630, 16
        %v705 = vsel %vm704, %v701, %v703
        %v706 = vsel %vm704, %v703, %v701
        %v707 = vsel %vm656, 1, 0
        %v708 = vsel %vm657, 1, 0
        %vm709 = vcmp.eq.s32.totalorder %v707, 1
        %vm710 = vcmp.eq.s32.totalorder %v708, 1
        %v711 = vsel %vm709, %v706, 0.0
        %v712 = vsel %vm710, %v705, 0.0
        %713 = vset.pattern.permute.xlu0 1
        %714 = vperm.xlu0 %713, %v431
        %v715 = vpop.permute.xlu0 %714
        %v717 = vmul.f32 %v711, %v715
        %v718 = vmul.f32 %v712, %v715
        %v719 = vadd.f32 %v698, %v717
        %v720 = vadd.f32 %v699, %v718
        %721 = vrot.lane.b32.xlu0 %v627, 15
        %v722 = vpop.permute.xlu0 %721
        %723 = vrot.lane.b32.xlu0 %v628, 15
        %v724 = vpop.permute.xlu0 %723
        %vm725 = vcmp.lt.s32.totalorder %v630, 15
        %v726 = vsel %vm725, %v722, %v724
        %v727 = vsel %vm725, %v724, %v722
        %vm728 = vmand %vm656, %vm662
        %vm729 = vmand %vm657, %vm663
        %v730 = vsel %vm728, 1, 0
        %v731 = vsel %vm729, 1, 0
        %vm732 = vcmp.eq.s32.totalorder %v730, 1
        %vm733 = vcmp.eq.s32.totalorder %v731, 1
        %v734 = vsel %vm732, %v727, 0.0
        %v735 = vsel %vm733, %v726, 0.0
        %736 = vset.pattern.permute.xlu0 2
        %737 = vperm.xlu0 %736, %v431
        %v738 = vpop.permute.xlu0 %737
        %v740 = vmul.f32 %v734, %v738
        %v741 = vmul.f32 %v735, %v738
        %v742 = vadd.f32 %v719, %v740
        %v743 = vadd.f32 %v720, %v741
        %744 = vrot.lane.b32.xlu0 %v627, 1
        %v745 = vpop.permute.xlu0 %744
        %746 = vrot.lane.b32.xlu0 %v628, 1
        %v747 = vpop.permute.xlu0 %746
        %vm748 = vcmp.lt.s32.totalorder %v630, 1
        %v749 = vsel %vm748, %v745, %v747
        %v750 = vsel %vm748, %v747, %v745
        %v751 = vsel %vm660, 1, 0
        %v752 = vsel %vm661, 1, 0
        %vm753 = vcmp.eq.s32.totalorder %v751, 1
        %vm754 = vcmp.eq.s32.totalorder %v752, 1
        %v755 = vsel %vm753, %v750, 0.0
        %v756 = vsel %vm754, %v749, 0.0
        %757 = vset.pattern.permute.xlu0 3
        %758 = vperm.xlu0 %757, %v431
        %v759 = vpop.permute.xlu0 %758
        %v761 = vmul.f32 %v755, %v759
        %v762 = vmul.f32 %v756, %v759
        %v763 = vadd.f32 %v742, %v761
        %v764 = vadd.f32 %v743, %v762
        %765 = vrot.lane.b32.xlu0 %v627, 127
        %v766 = vpop.permute.xlu0 %765
        %767 = vrot.lane.b32.xlu0 %v628, 127
        %v768 = vpop.permute.xlu0 %767
        %vm769 = vcmp.lt.s32.totalorder %v630, 127
        %v770 = vsel %vm769, %v766, %v768
        %v771 = vsel %vm769, %v768, %v766
        %v772 = vsel %vm662, 1, 0
        %v773 = vsel %vm663, 1, 0
        %vm774 = vcmp.eq.s32.totalorder %v772, 1
        %vm775 = vcmp.eq.s32.totalorder %v773, 1
        %v776 = vsel %vm774, %v770, 0.0
        %v777 = vsel %vm775, %v771, 0.0
        %778 = vset.pattern.permute.xlu0 5
        %779 = vperm.xlu0 %778, %v431
        %v780 = vpop.permute.xlu0 %779
        %v782 = vmul.f32 %v776, %v780
        %v783 = vmul.f32 %v777, %v780
        %v784 = vadd.f32 %v763, %v782
        %v785 = vadd.f32 %v764, %v783
        %786 = vrot.lane.b32.xlu0 %v627, 113
        %v787 = vpop.permute.xlu0 %786
        %788 = vrot.lane.b32.xlu0 %v628, 113
        %v789 = vpop.permute.xlu0 %788
        %vm790 = vcmp.lt.s32.totalorder %v630, 113
        %v791 = vsel %vm790, %v787, %v789
        %v792 = vsel %vm790, %v789, %v787
        %vm793 = vmand %vm658, %vm660
        %vm794 = vmand %vm659, %vm661
        %v795 = vsel %vm793, 1, 0
        %v796 = vsel %vm794, 1, 0
        %vm797 = vcmp.eq.s32.totalorder %v795, 1
        %vm798 = vcmp.eq.s32.totalorder %v796, 1
        %v799 = vsel %vm797, %v791, 0.0
        %v800 = vsel %vm798, %v792, 0.0
        %801 = vset.pattern.permute.xlu0 6
        %802 = vperm.xlu0 %801, %v431
        %v803 = vpop.permute.xlu0 %802
        %v805 = vmul.f32 %v799, %v803
        %v806 = vmul.f32 %v800, %v803
        %v807 = vadd.f32 %v784, %v805
        %v808 = vadd.f32 %v785, %v806
        %809 = vrot.lane.b32.xlu0 %v627, 112
        %v810 = vpop.permute.xlu0 %809
        %811 = vrot.lane.b32.xlu0 %v628, 112
        %v812 = vpop.permute.xlu0 %811
        %vm813 = vcmp.lt.s32.totalorder %v630, 112
        %v814 = vsel %vm813, %v810, %v812
        %v815 = vsel %vm813, %v812, %v810
        %v816 = vsel %vm658, 1, 0
        %v817 = vsel %vm659, 1, 0
        %vm818 = vcmp.eq.s32.totalorder %v816, 1
        %vm819 = vcmp.eq.s32.totalorder %v817, 1
        %v820 = vsel %vm818, %v814, 0.0
        %v821 = vsel %vm819, %v815, 0.0
        %822 = vset.pattern.permute.xlu0 7
        %823 = vperm.xlu0 %822, %v431
        %v824 = vpop.permute.xlu0 %823
        %v826 = vmul.f32 %v820, %v824
        %v827 = vmul.f32 %v821, %v824
        %v828 = vadd.f32 %v807, %v826
        %v829 = vadd.f32 %v808, %v827
        %830 = vrot.lane.b32.xlu0 %v627, 111
        %v831 = vpop.permute.xlu0 %830
        %832 = vrot.lane.b32.xlu0 %v628, 111
        %v833 = vpop.permute.xlu0 %832
        %vm834 = vcmp.lt.s32.totalorder %v630, 111
        %v835 = vsel %vm834, %v831, %v833
        %v836 = vsel %vm834, %v833, %v831
        %vm837 = vmand %vm658, %vm662
        %vm838 = vmand %vm659, %vm663
        %v839 = vsel %vm837, 1, 0
        %v840 = vsel %vm838, 1, 0
        %vm841 = vcmp.eq.s32.totalorder %v839, 1
        %vm842 = vcmp.eq.s32.totalorder %v840, 1
        %v843 = vsel %vm841, %v835, 0.0
        %v844 = vsel %vm842, %v836, 0.0
        %845 = vset.pattern.permute.xlu0 8
        %846 = vperm.xlu0 %845, %v431
        %v847 = vpop.permute.xlu0 %846
        %v849 = vmul.f32 %v843, %v847
        %v850 = vmul.f32 %v844, %v847
        %v851 = vadd.f32 %v828, %v849
        %v852 = vadd.f32 %v829, %v850
        %v855 = vrot.slane %v851, 4
        %v856 = vrot.slane %v852, 4
        %v859 = vmul.f32 %v851, %v855
        %v860 = vmul.f32 %v852, %v856
        %v861 = vsel %vm441, %v859, 0.0
        %v862 = vsel %vm441, %v860, 0.0
        %v863 = vadd.f32 %v861, %v862
        %864 = vadd.xlane.f32.xlu0 %v863
        %v865 = vpop.xlane.xlu0 %864
        %v866 = vrcp.pop 256.0
        %v867 = vmul.f32 %v865, %v866
        %v868 = vlaneseq
        %v869 = vshrl.u32 %v868, 7
        %v870 = vsub.s32 0, %v869
        %v871 = vrot.slane %v867, %v870
        %v872 = vmul.f32 %v871, %v433
        %v873 = vlaneseq
        %v874 = vshrl.u32 %v873, 7
        %v875 = vsub.s32 1, %v874
        %v876 = vrot.slane %v867, %v875
        %v877 = vmul.f32 %v876, %v433
        %879 = vrot.lane.b32.xlu0 %v877, 127
        %v880 = vpop.permute.xlu0 %879
        %v882 = vadd.f32 %v872, %v880
        %v883 = vlaneseq
        %v884 = vshrl.u32 %v883, 7
        %v885 = vsub.s32 2, %v884
        %v886 = vrot.slane %v867, %v885
        %v887 = vmul.f32 %v886, %v433
        %889 = vrot.lane.b32.xlu0 %v887, 126
        %v890 = vpop.permute.xlu0 %889
        %v892 = vadd.f32 %v882, %v890
        %v893 = vlaneseq
        %v894 = vshrl.u32 %v893, 7
        %v895 = vsub.s32 3, %v894
        %v896 = vrot.slane %v867, %v895
        %v897 = vmul.f32 %v896, %v433
        %899 = vrot.lane.b32.xlu0 %v897, 125
        %v900 = vpop.permute.xlu0 %899
        %v902 = vadd.f32 %v892, %v900
        %903 = vrot.lane.b32.xlu0 %v429, 126
        %v904 = vpop.permute.xlu0 %903
        %v906 = vadd.f32 %v902, %v904
        %908 = vset.pattern.permute.xlu0 0
        %909 = vperm.xlu0 %908, %v906
        %v910 = vpop.permute.xlu0 %909
        %v912 = vmul.f32 %v859, %v910
        %v913 = vmul.f32 %v860, %v910
        %v914 = vlaneseq
        %v915 = vshrl.u32 %v914, 7
        %v916 = vsub.s32 0, %v915
        %v917 = vrot.slane %v912, %v916
        %v918 = vlaneseq
        %v919 = vshrl.u32 %v918, 7
        %v920 = vsub.s32 0, %v919
        %v921 = vrot.slane %v913, %v920
        %923 = vset.pattern.permute.xlu0 0
        %924 = vperm.xlu0 %923, %v434
        %v925 = vpop.permute.xlu0 %924
        %v927 = vmul.f32 %v917, %v925
        %v928 = vmul.f32 %v921, %v925
        %v929 = vlaneseq
        %v930 = vshrl.u32 %v929, 7
        %v931 = vsub.s32 1, %v930
        %v932 = vrot.slane %v912, %v931
        %v933 = vlaneseq
        %v934 = vshrl.u32 %v933, 7
        %v935 = vsub.s32 1, %v934
        %v936 = vrot.slane %v913, %v935
        %937 = vset.pattern.permute.xlu0 1
        %938 = vperm.xlu0 %937, %v434
        %v939 = vpop.permute.xlu0 %938
        %v941 = vmul.f32 %v932, %v939
        %v942 = vmul.f32 %v936, %v939
        %v943 = vadd.f32 %v927, %v941
        %v944 = vadd.f32 %v928, %v942
        %v945 = vlaneseq
        %v946 = vshrl.u32 %v945, 7
        %v947 = vsub.s32 2, %v946
        %v948 = vrot.slane %v912, %v947
        %v949 = vlaneseq
        %v950 = vshrl.u32 %v949, 7
        %v951 = vsub.s32 2, %v950
        %v952 = vrot.slane %v913, %v951
        %953 = vset.pattern.permute.xlu0 2
        %954 = vperm.xlu0 %953, %v434
        %v955 = vpop.permute.xlu0 %954
        %v957 = vmul.f32 %v948, %v955
        %v958 = vmul.f32 %v952, %v955
        %v959 = vadd.f32 %v943, %v957
        %v960 = vadd.f32 %v944, %v958
        %v961 = vlaneseq
        %v962 = vshrl.u32 %v961, 7
        %v963 = vsub.s32 3, %v962
        %v964 = vrot.slane %v912, %v963
        %v965 = vlaneseq
        %v966 = vshrl.u32 %v965, 7
        %v967 = vsub.s32 3, %v966
        %v968 = vrot.slane %v913, %v967
        %969 = vset.pattern.permute.xlu0 3
        %970 = vperm.xlu0 %969, %v434
        %v971 = vpop.permute.xlu0 %970
        %v973 = vmul.f32 %v964, %v971
        %v974 = vmul.f32 %v968, %v971
        %v975 = vadd.f32 %v959, %v973
        %v976 = vadd.f32 %v960, %v974
        %977 = vset.pattern.permute.xlu0 3
        %978 = vperm.xlu0 %977, %v429
        %v979 = vpop.permute.xlu0 %978
        %v981 = vadd.f32 %v975, %v979
        %v982 = vadd.f32 %v976, %v979
        %983 = vset.pattern.permute.xlu0 7
        %984 = vperm.xlu0 %983, %v429
        %v985 = vpop.permute.xlu0 %984
        %v987 = vmul.f32 %v981, %v985
        %v988 = vmul.f32 %v982, %v985
        %v991 = vcombine.low %v987, %v988
        %v993 = vadd.f32 %v437, %v991
        %v995 = vcombine.high %v993, %v993
        %v997 = vsel %vm441, %v993, 0.0
        %v998 = vrot.slane %v997, 4
        %v999 = vadd.f32 %v997, %v998
        %v1000 = vrot.slane %v999, 2
        %v1001 = vadd.f32 %v999, %v1000
        %v1002 = vrot.slane %v1001, 1
        %v1003 = vadd.f32 %v1001, %v1002
        %v1004 = vsel %vm441, %v995, 0.0
        %v1005 = vrot.slane %v1004, 4
        %v1006 = vadd.f32 %v1004, %v1005
        %v1007 = vrot.slane %v1006, 2
        %v1008 = vadd.f32 %v1006, %v1007
        %v1009 = vrot.slane %v1008, 1
        %v1010 = vadd.f32 %v1008, %v1009
        %v1011 = vmul.f32 %v1003, %v456
        %v1012 = vmul.f32 %v1010, %v456
        %v1015 = vcombine.low %v1011, %v1012
        %v1017 = vsub.f32 %v993, %v1015
        %v1018 = vmul.f32 %v1017, %v1017
        %v1020 = vcombine.high %v1018, %v1018
        %v1022 = vsel %vm441, %v1018, 0.0
        %v1023 = vrot.slane %v1022, 4
        %v1024 = vadd.f32 %v1022, %v1023
        %v1025 = vrot.slane %v1024, 2
        %v1026 = vadd.f32 %v1024, %v1025
        %v1027 = vrot.slane %v1026, 1
        %v1028 = vadd.f32 %v1026, %v1027
        %v1029 = vsel %vm441, %v1020, 0.0
        %v1030 = vrot.slane %v1029, 4
        %v1031 = vadd.f32 %v1029, %v1030
        %v1032 = vrot.slane %v1031, 2
        %v1033 = vadd.f32 %v1031, %v1032
        %v1034 = vrot.slane %v1033, 1
        %v1035 = vadd.f32 %v1033, %v1034
        %v1036 = vmul.f32 %v1028, %v456
        %v1037 = vmul.f32 %v1035, %v456
        %v1038 = vadd.f32 %v1036, 1e-06
        %v1039 = vadd.f32 %v1037, 1e-06
        %v1040 = vrsqrt.pop %v1038
        %v1041 = vrsqrt.pop %v1039
        %v1044 = vcombine.low %v1040, %v1041
        %v1046 = vmul.f32 %v1017, %v1044
        %1047 = vset.pattern.permute.xlu0 4
        %1048 = vperm.xlu0 %1047, %v429
        %v1049 = vpop.permute.xlu0 %1048
        %v1051 = vunpack.c.l.s4 839922192
        %v1052 = vunpack.c.0.s8 %v1051
        %v1053 = vlaneseq
        %v1054 = vshrl.u32 %v1053, 7
        %v1055 = vsub.s32 %v1052, %v1054
        %v1056 = vrot.slane %v1049, %v1055
        %v1058 = vmul.f32 %v1046, %v1056
        %1059 = vset.pattern.permute.xlu0 5
        %1060 = vperm.xlu0 %1059, %v429
        %v1061 = vpop.permute.xlu0 %1060
        %v1063 = vunpack.c.l.s4 839922192
        %v1064 = vunpack.c.0.s8 %v1063
        %v1065 = vlaneseq
        %v1066 = vshrl.u32 %v1065, 7
        %v1067 = vsub.s32 %v1064, %v1066
        %v1068 = vrot.slane %v1061, %v1067
        %v1070 = vadd.f32 %v1058, %v1068
        %v1072 = vlaneseq
        %v1073 = vshrl.u32 %v1072, 7
        %v1074 = vsub.s32 0, %v1073
        %v1075 = vrot.slane %v1070, %v1074
        %v1076 = vlaneseq
        %v1077 = vshrl.u32 %v1076, 7
        %v1078 = vsub.s32 4, %v1077
        %v1079 = vrot.slane %v1070, %v1078
        %v1082 = vlaneseq
        %v1083 = vshrl.u32 %v1082, 7
        %v1084 = vsub.s32 0, %v1083
        %v1085 = vrot.slane %v1075, %v1084
        %v1086 = vlaneseq
        %v1087 = vshrl.u32 %v1086, 7
        %v1088 = vsub.s32 0, %v1087
        %v1089 = vrot.slane %v1079, %v1088
        %1091 = vset.pattern.permute.xlu0 0
        %1092 = vperm.xlu0 %1091, %v435
        %v1093 = vpop.permute.xlu0 %1092
        %v1095 = vmul.f32 %v1085, %v1093
        %v1096 = vmul.f32 %v1089, %v1093
        %v1097 = vlaneseq
        %v1098 = vshrl.u32 %v1097, 7
        %v1099 = vsub.s32 1, %v1098
        %v1100 = vrot.slane %v1070, %v1099
        %v1101 = vlaneseq
        %v1102 = vshrl.u32 %v1101, 7
        %v1103 = vsub.s32 5, %v1102
        %v1104 = vrot.slane %v1070, %v1103
        %v1107 = vlaneseq
        %v1108 = vshrl.u32 %v1107, 7
        %v1109 = vsub.s32 1, %v1108
        %v1110 = vrot.slane %v1100, %v1109
        %v1111 = vlaneseq
        %v1112 = vshrl.u32 %v1111, 7
        %v1113 = vsub.s32 1, %v1112
        %v1114 = vrot.slane %v1104, %v1113
        %1115 = vset.pattern.permute.xlu0 1
        %1116 = vperm.xlu0 %1115, %v435
        %v1117 = vpop.permute.xlu0 %1116
        %v1119 = vmul.f32 %v1110, %v1117
        %v1120 = vmul.f32 %v1114, %v1117
        %v1121 = vadd.f32 %v1095, %v1119
        %v1122 = vadd.f32 %v1096, %v1120
        %v1123 = vlaneseq
        %v1124 = vshrl.u32 %v1123, 7
        %v1125 = vsub.s32 2, %v1124
        %v1126 = vrot.slane %v1070, %v1125
        %v1127 = vlaneseq
        %v1128 = vshrl.u32 %v1127, 7
        %v1129 = vsub.s32 6, %v1128
        %v1130 = vrot.slane %v1070, %v1129
        %v1133 = vlaneseq
        %v1134 = vshrl.u32 %v1133, 7
        %v1135 = vsub.s32 2, %v1134
        %v1136 = vrot.slane %v1126, %v1135
        %v1137 = vlaneseq
        %v1138 = vshrl.u32 %v1137, 7
        %v1139 = vsub.s32 2, %v1138
        %v1140 = vrot.slane %v1130, %v1139
        %1141 = vset.pattern.permute.xlu0 2
        %1142 = vperm.xlu0 %1141, %v435
        %v1143 = vpop.permute.xlu0 %1142
        %v1145 = vmul.f32 %v1136, %v1143
        %v1146 = vmul.f32 %v1140, %v1143
        %v1147 = vadd.f32 %v1121, %v1145
        %v1148 = vadd.f32 %v1122, %v1146
        %v1149 = vlaneseq
        %v1150 = vshrl.u32 %v1149, 7
        %v1151 = vsub.s32 3, %v1150
        %v1152 = vrot.slane %v1070, %v1151
        %v1153 = vlaneseq
        %v1154 = vshrl.u32 %v1153, 7
        %v1155 = vsub.s32 7, %v1154
        %v1156 = vrot.slane %v1070, %v1155
        %v1159 = vlaneseq
        %v1160 = vshrl.u32 %v1159, 7
        %v1161 = vsub.s32 3, %v1160
        %v1162 = vrot.slane %v1152, %v1161
        %v1163 = vlaneseq
        %v1164 = vshrl.u32 %v1163, 7
        %v1165 = vsub.s32 3, %v1164
        %v1166 = vrot.slane %v1156, %v1165
        %1167 = vset.pattern.permute.xlu0 3
        %1168 = vperm.xlu0 %1167, %v435
        %v1169 = vpop.permute.xlu0 %1168
        %v1171 = vmul.f32 %v1162, %v1169
        %v1172 = vmul.f32 %v1166, %v1169
        %v1173 = vadd.f32 %v1147, %v1171
        %v1174 = vadd.f32 %v1148, %v1172
        %1175 = vset.pattern.permute.xlu0 2
        %1176 = vperm.xlu0 %1175, %v430
        %v1177 = vpop.permute.xlu0 %1176
        %v1179 = vadd.f32 %v1173, %v1177
        %v1180 = vadd.f32 %v1174, %v1177
        %v1183 = vrot.slane %v1179, 4
        %v1184 = vrot.slane %v1180, 4
        %v1187 = vmul.f32 %v1179, %v1183
        %v1188 = vmul.f32 %v1180, %v1184
        %v1189 = vlaneseq
        %v1190 = vshrl.u32 %v1189, 7
        %v1191 = vsub.s32 0, %v1190
        %v1192 = vrot.slane %v1187, %v1191
        %v1193 = vlaneseq
        %v1194 = vshrl.u32 %v1193, 7
        %v1195 = vsub.s32 0, %v1194
        %v1196 = vrot.slane %v1188, %v1195
        %1198 = vset.pattern.permute.xlu0 0
        %1199 = vperm.xlu0 %1198, %v436
        %v1200 = vpop.permute.xlu0 %1199
        %v1202 = vmul.f32 %v1192, %v1200
        %v1203 = vmul.f32 %v1196, %v1200
        %v1204 = vlaneseq
        %v1205 = vshrl.u32 %v1204, 7
        %v1206 = vsub.s32 1, %v1205
        %v1207 = vrot.slane %v1187, %v1206
        %v1208 = vlaneseq
        %v1209 = vshrl.u32 %v1208, 7
        %v1210 = vsub.s32 1, %v1209
        %v1211 = vrot.slane %v1188, %v1210
        %1212 = vset.pattern.permute.xlu0 1
        %1213 = vperm.xlu0 %1212, %v436
        %v1214 = vpop.permute.xlu0 %1213
        %v1216 = vmul.f32 %v1207, %v1214
        %v1217 = vmul.f32 %v1211, %v1214
        %v1218 = vadd.f32 %v1202, %v1216
        %v1219 = vadd.f32 %v1203, %v1217
        %v1220 = vlaneseq
        %v1221 = vshrl.u32 %v1220, 7
        %v1222 = vsub.s32 2, %v1221
        %v1223 = vrot.slane %v1187, %v1222
        %v1224 = vlaneseq
        %v1225 = vshrl.u32 %v1224, 7
        %v1226 = vsub.s32 2, %v1225
        %v1227 = vrot.slane %v1188, %v1226
        %1228 = vset.pattern.permute.xlu0 2
        %1229 = vperm.xlu0 %1228, %v436
        %v1230 = vpop.permute.xlu0 %1229
        %v1232 = vmul.f32 %v1223, %v1230
        %v1233 = vmul.f32 %v1227, %v1230
        %v1234 = vadd.f32 %v1218, %v1232
        %v1235 = vadd.f32 %v1219, %v1233
        %v1236 = vlaneseq
        %v1237 = vshrl.u32 %v1236, 7
        %v1238 = vsub.s32 3, %v1237
        %v1239 = vrot.slane %v1187, %v1238
        %v1240 = vlaneseq
        %v1241 = vshrl.u32 %v1240, 7
        %v1242 = vsub.s32 3, %v1241
        %v1243 = vrot.slane %v1188, %v1242
        %1244 = vset.pattern.permute.xlu0 3
        %1245 = vperm.xlu0 %1244, %v436
        %v1246 = vpop.permute.xlu0 %1245
        %v1248 = vmul.f32 %v1239, %v1246
        %v1249 = vmul.f32 %v1243, %v1246
        %v1250 = vadd.f32 %v1234, %v1248
        %v1251 = vadd.f32 %v1235, %v1249
        %1252 = vset.pattern.permute.xlu0 6
        %1253 = vperm.xlu0 %1252, %v429
        %v1254 = vpop.permute.xlu0 %1253
        %v1256 = vadd.f32 %v1250, %v1254
        %v1257 = vadd.f32 %v1251, %v1254
        %1258 = vset.pattern.permute.xlu0 8
        %1259 = vperm.xlu0 %1258, %v429
        %v1260 = vpop.permute.xlu0 %1259
        %v1262 = vmul.f32 %v1256, %v1260
        %v1263 = vmul.f32 %v1257, %v1260
        %v1266 = vcombine.low %v1262, %v1263
        %v1268 = vadd.f32 %v993, %v1266
        %1269 = vst [vmem:[%s411] sm:$0xff] %v1268
        %v1270 = vld [vmem:[%s428] sm:$0xff]
        %v1272 = vcombine.high %v1270, %v1270
        %v1274 = vsel %vm441, %v1270, 0.0
        %v1275 = vrot.slane %v1274, 4
        %v1276 = vadd.f32 %v1274, %v1275
        %v1277 = vrot.slane %v1276, 2
        %v1278 = vadd.f32 %v1276, %v1277
        %v1279 = vrot.slane %v1278, 1
        %v1280 = vadd.f32 %v1278, %v1279
        %v1281 = vsel %vm441, %v1272, 0.0
        %v1282 = vrot.slane %v1281, 4
        %v1283 = vadd.f32 %v1281, %v1282
        %v1284 = vrot.slane %v1283, 2
        %v1285 = vadd.f32 %v1283, %v1284
        %v1286 = vrot.slane %v1285, 1
        %v1287 = vadd.f32 %v1285, %v1286
        %v1288 = vmul.f32 %v1280, %v456
        %v1289 = vmul.f32 %v1287, %v456
        %v1292 = vcombine.low %v1288, %v1289
        %v1294 = vsub.f32 %v1270, %v1292
        %v1295 = vmul.f32 %v1294, %v1294
        %v1297 = vcombine.high %v1295, %v1295
        %v1299 = vsel %vm441, %v1295, 0.0
        %v1300 = vrot.slane %v1299, 4
        %v1301 = vadd.f32 %v1299, %v1300
        %v1302 = vrot.slane %v1301, 2
        %v1303 = vadd.f32 %v1301, %v1302
        %v1304 = vrot.slane %v1303, 1
        %v1305 = vadd.f32 %v1303, %v1304
        %v1306 = vsel %vm441, %v1297, 0.0
        %v1307 = vrot.slane %v1306, 4
        %v1308 = vadd.f32 %v1306, %v1307
        %v1309 = vrot.slane %v1308, 2
        %v1310 = vadd.f32 %v1308, %v1309
        %v1311 = vrot.slane %v1310, 1
        %v1312 = vadd.f32 %v1310, %v1311
        %v1313 = vmul.f32 %v1305, %v456
        %v1314 = vmul.f32 %v1312, %v456
        %v1315 = vadd.f32 %v1313, 1e-06
        %v1316 = vadd.f32 %v1314, 1e-06
        %v1317 = vrsqrt.pop %v1315
        %v1318 = vrsqrt.pop %v1316
        %v1321 = vcombine.low %v1317, %v1318
        %v1323 = vmul.f32 %v1294, %v1321
        %v1324 = vmul.f32 %v1323, %v503
        %v1325 = vadd.f32 %v1324, %v515
        %v1327 = vlaneseq
        %v1328 = vshrl.u32 %v1327, 7
        %v1329 = vsub.s32 0, %v1328
        %v1330 = vrot.slane %v1325, %v1329
        %v1331 = vlaneseq
        %v1332 = vshrl.u32 %v1331, 7
        %v1333 = vsub.s32 4, %v1332
        %v1334 = vrot.slane %v1325, %v1333
        %v1337 = vlaneseq
        %v1338 = vshrl.u32 %v1337, 7
        %v1339 = vsub.s32 0, %v1338
        %v1340 = vrot.slane %v1330, %v1339
        %v1341 = vlaneseq
        %v1342 = vshrl.u32 %v1341, 7
        %v1343 = vsub.s32 0, %v1342
        %v1344 = vrot.slane %v1334, %v1343
        %v1345 = vmul.f32 %v1340, %v540
        %v1346 = vmul.f32 %v1344, %v540
        %v1347 = vlaneseq
        %v1348 = vshrl.u32 %v1347, 7
        %v1349 = vsub.s32 1, %v1348
        %v1350 = vrot.slane %v1325, %v1349
        %v1351 = vlaneseq
        %v1352 = vshrl.u32 %v1351, 7
        %v1353 = vsub.s32 5, %v1352
        %v1354 = vrot.slane %v1325, %v1353
        %v1357 = vlaneseq
        %v1358 = vshrl.u32 %v1357, 7
        %v1359 = vsub.s32 1, %v1358
        %v1360 = vrot.slane %v1350, %v1359
        %v1361 = vlaneseq
        %v1362 = vshrl.u32 %v1361, 7
        %v1363 = vsub.s32 1, %v1362
        %v1364 = vrot.slane %v1354, %v1363
        %v1365 = vmul.f32 %v1360, %v564
        %v1366 = vmul.f32 %v1364, %v564
        %v1367 = vadd.f32 %v1345, %v1365
        %v1368 = vadd.f32 %v1346, %v1366
        %v1369 = vlaneseq
        %v1370 = vshrl.u32 %v1369, 7
        %v1371 = vsub.s32 2, %v1370
        %v1372 = vrot.slane %v1325, %v1371
        %v1373 = vlaneseq
        %v1374 = vshrl.u32 %v1373, 7
        %v1375 = vsub.s32 6, %v1374
        %v1376 = vrot.slane %v1325, %v1375
        %v1379 = vlaneseq
        %v1380 = vshrl.u32 %v1379, 7
        %v1381 = vsub.s32 2, %v1380
        %v1382 = vrot.slane %v1372, %v1381
        %v1383 = vlaneseq
        %v1384 = vshrl.u32 %v1383, 7
        %v1385 = vsub.s32 2, %v1384
        %v1386 = vrot.slane %v1376, %v1385
        %v1387 = vmul.f32 %v1382, %v590
        %v1388 = vmul.f32 %v1386, %v590
        %v1389 = vadd.f32 %v1367, %v1387
        %v1390 = vadd.f32 %v1368, %v1388
        %v1391 = vlaneseq
        %v1392 = vshrl.u32 %v1391, 7
        %v1393 = vsub.s32 3, %v1392
        %v1394 = vrot.slane %v1325, %v1393
        %v1395 = vlaneseq
        %v1396 = vshrl.u32 %v1395, 7
        %v1397 = vsub.s32 7, %v1396
        %v1398 = vrot.slane %v1325, %v1397
        %v1401 = vlaneseq
        %v1402 = vshrl.u32 %v1401, 7
        %v1403 = vsub.s32 3, %v1402
        %v1404 = vrot.slane %v1394, %v1403
        %v1405 = vlaneseq
        %v1406 = vshrl.u32 %v1405, 7
        %v1407 = vsub.s32 3, %v1406
        %v1408 = vrot.slane %v1398, %v1407
        %v1409 = vmul.f32 %v1404, %v616
        %v1410 = vmul.f32 %v1408, %v616
        %v1411 = vadd.f32 %v1389, %v1409
        %v1412 = vadd.f32 %v1390, %v1410
        %v1413 = vadd.f32 %v1411, %v625
        %v1414 = vadd.f32 %v1412, %v625
        %v1415 = vmul.f32 %v1413, %v667
        %v1416 = vmul.f32 %v1414, %v667
        %v1417 = vadd.f32 %v1415, %v673
        %v1418 = vadd.f32 %v1416, %v673
        %1419 = vrot.lane.b32.xlu0 %v1413, 17
        %v1420 = vpop.permute.xlu0 %1419
        %1421 = vrot.lane.b32.xlu0 %v1414, 17
        %v1422 = vpop.permute.xlu0 %1421
        %v1423 = vsel %vm681, %v1420, %v1422
        %v1424 = vsel %vm681, %v1422, %v1420
        %v1425 = vsel %vm688, %v1424, 0.0
        %v1426 = vsel %vm689, %v1423, 0.0
        %v1427 = vmul.f32 %v1425, %v694
        %v1428 = vmul.f32 %v1426, %v694
        %v1429 = vadd.f32 %v1417, %v1427
        %v1430 = vadd.f32 %v1418, %v1428
        %1431 = vrot.lane.b32.xlu0 %v1413, 16
        %v1432 = vpop.permute.xlu0 %1431
        %1433 = vrot.lane.b32.xlu0 %v1414, 16
        %v1434 = vpop.permute.xlu0 %1433
        %v1435 = vsel %vm704, %v1432, %v1434
        %v1436 = vsel %vm704, %v1434, %v1432
        %v1437 = vsel %vm709, %v1436, 0.0
        %v1438 = vsel %vm710, %v1435, 0.0
        %v1439 = vmul.f32 %v1437, %v715
        %v1440 = vmul.f32 %v1438, %v715
        %v1441 = vadd.f32 %v1429, %v1439
        %v1442 = vadd.f32 %v1430, %v1440
        %1443 = vrot.lane.b32.xlu0 %v1413, 15
        %v1444 = vpop.permute.xlu0 %1443
        %1445 = vrot.lane.b32.xlu0 %v1414, 15
        %v1446 = vpop.permute.xlu0 %1445
        %v1447 = vsel %vm725, %v1444, %v1446
        %v1448 = vsel %vm725, %v1446, %v1444
        %v1449 = vsel %vm732, %v1448, 0.0
        %v1450 = vsel %vm733, %v1447, 0.0
        %v1451 = vmul.f32 %v1449, %v738
        %v1452 = vmul.f32 %v1450, %v738
        %v1453 = vadd.f32 %v1441, %v1451
        %v1454 = vadd.f32 %v1442, %v1452
        %1455 = vrot.lane.b32.xlu0 %v1413, 1
        %v1456 = vpop.permute.xlu0 %1455
        %1457 = vrot.lane.b32.xlu0 %v1414, 1
        %v1458 = vpop.permute.xlu0 %1457
        %v1459 = vsel %vm748, %v1456, %v1458
        %v1460 = vsel %vm748, %v1458, %v1456
        %v1461 = vsel %vm753, %v1460, 0.0
        %v1462 = vsel %vm754, %v1459, 0.0
        %v1463 = vmul.f32 %v1461, %v759
        %v1464 = vmul.f32 %v1462, %v759
        %v1465 = vadd.f32 %v1453, %v1463
        %v1466 = vadd.f32 %v1454, %v1464
        %1467 = vrot.lane.b32.xlu0 %v1413, 127
        %v1468 = vpop.permute.xlu0 %1467
        %1469 = vrot.lane.b32.xlu0 %v1414, 127
        %v1470 = vpop.permute.xlu0 %1469
        %v1471 = vsel %vm769, %v1468, %v1470
        %v1472 = vsel %vm769, %v1470, %v1468
        %v1473 = vsel %vm774, %v1471, 0.0
        %v1474 = vsel %vm775, %v1472, 0.0
        %v1475 = vmul.f32 %v1473, %v780
        %v1476 = vmul.f32 %v1474, %v780
        %v1477 = vadd.f32 %v1465, %v1475
        %v1478 = vadd.f32 %v1466, %v1476
        %1479 = vrot.lane.b32.xlu0 %v1413, 113
        %v1480 = vpop.permute.xlu0 %1479
        %1481 = vrot.lane.b32.xlu0 %v1414, 113
        %v1482 = vpop.permute.xlu0 %1481
        %v1483 = vsel %vm790, %v1480, %v1482
        %v1484 = vsel %vm790, %v1482, %v1480
        %v1485 = vsel %vm797, %v1483, 0.0
        %v1486 = vsel %vm798, %v1484, 0.0
        %v1487 = vmul.f32 %v1485, %v803
        %v1488 = vmul.f32 %v1486, %v803
        %v1489 = vadd.f32 %v1477, %v1487
        %v1490 = vadd.f32 %v1478, %v1488
        %1491 = vrot.lane.b32.xlu0 %v1413, 112
        %v1492 = vpop.permute.xlu0 %1491
        %1493 = vrot.lane.b32.xlu0 %v1414, 112
        %v1494 = vpop.permute.xlu0 %1493
        %v1495 = vsel %vm813, %v1492, %v1494
        %v1496 = vsel %vm813, %v1494, %v1492
        %v1497 = vsel %vm818, %v1495, 0.0
        %v1498 = vsel %vm819, %v1496, 0.0
        %v1499 = vmul.f32 %v1497, %v824
        %v1500 = vmul.f32 %v1498, %v824
        %v1501 = vadd.f32 %v1489, %v1499
        %v1502 = vadd.f32 %v1490, %v1500
        %1503 = vrot.lane.b32.xlu0 %v1413, 111
        %v1504 = vpop.permute.xlu0 %1503
        %1505 = vrot.lane.b32.xlu0 %v1414, 111
        %v1506 = vpop.permute.xlu0 %1505
        %v1507 = vsel %vm834, %v1504, %v1506
        %v1508 = vsel %vm834, %v1506, %v1504
        %v1509 = vsel %vm841, %v1507, 0.0
        %v1510 = vsel %vm842, %v1508, 0.0
        %v1511 = vmul.f32 %v1509, %v847
        %v1512 = vmul.f32 %v1510, %v847
        %v1513 = vadd.f32 %v1501, %v1511
        %v1514 = vadd.f32 %v1502, %v1512
        %v1517 = vrot.slane %v1513, 4
        %v1518 = vrot.slane %v1514, 4
        %v1521 = vmul.f32 %v1513, %v1517
        %v1522 = vmul.f32 %v1514, %v1518
        %v1523 = vsel %vm441, %v1521, 0.0
        %v1524 = vsel %vm441, %v1522, 0.0
        %v1525 = vadd.f32 %v1523, %v1524
        %1526 = vadd.xlane.f32.xlu0 %v1525
        %v1527 = vpop.xlane.xlu0 %1526
        %v1528 = vmul.f32 %v1527, %v866
        %v1529 = vlaneseq
        %v1530 = vshrl.u32 %v1529, 7
        %v1531 = vsub.s32 0, %v1530
        %v1532 = vrot.slane %v1528, %v1531
        %v1533 = vmul.f32 %v1532, %v433
        %v1534 = vlaneseq
        %v1535 = vshrl.u32 %v1534, 7
        %v1536 = vsub.s32 1, %v1535
        %v1537 = vrot.slane %v1528, %v1536
        %v1538 = vmul.f32 %v1537, %v433
        %1540 = vrot.lane.b32.xlu0 %v1538, 127
        %v1541 = vpop.permute.xlu0 %1540
        %v1543 = vadd.f32 %v1533, %v1541
        %v1544 = vlaneseq
        %v1545 = vshrl.u32 %v1544, 7
        %v1546 = vsub.s32 2, %v1545
        %v1547 = vrot.slane %v1528, %v1546
        %v1548 = vmul.f32 %v1547, %v433
        %1550 = vrot.lane.b32.xlu0 %v1548, 126
        %v1551 = vpop.permute.xlu0 %1550
        %v1553 = vadd.f32 %v1543, %v1551
        %v1554 = vlaneseq
        %v1555 = vshrl.u32 %v1554, 7
        %v1556 = vsub.s32 3, %v1555
        %v1557 = vrot.slane %v1528, %v1556
        %v1558 = vmul.f32 %v1557, %v433
        %1560 = vrot.lane.b32.xlu0 %v1558, 125
        %v1561 = vpop.permute.xlu0 %1560
        %v1563 = vadd.f32 %v1553, %v1561
        %v1564 = vadd.f32 %v1563, %v904
        %1566 = vset.pattern.permute.xlu0 0
        %1567 = vperm.xlu0 %1566, %v1564
        %v1568 = vpop.permute.xlu0 %1567
        %v1570 = vmul.f32 %v1521, %v1568
        %v1571 = vmul.f32 %v1522, %v1568
        %v1572 = vlaneseq
        %v1573 = vshrl.u32 %v1572, 7
        %v1574 = vsub.s32 0, %v1573
        %v1575 = vrot.slane %v1570, %v1574
        %v1576 = vlaneseq
        %v1577 = vshrl.u32 %v1576, 7
        %v1578 = vsub.s32 0, %v1577
        %v1579 = vrot.slane %v1571, %v1578
        %v1580 = vmul.f32 %v1575, %v925
        %v1581 = vmul.f32 %v1579, %v925
        %v1582 = vlaneseq
        %v1583 = vshrl.u32 %v1582, 7
        %v1584 = vsub.s32 1, %v1583
        %v1585 = vrot.slane %v1570, %v1584
        %v1586 = vlaneseq
        %v1587 = vshrl.u32 %v1586, 7
        %v1588 = vsub.s32 1, %v1587
        %v1589 = vrot.slane %v1571, %v1588
        %v1590 = vmul.f32 %v1585, %v939
        %v1591 = vmul.f32 %v1589, %v939
        %v1592 = vadd.f32 %v1580, %v1590
        %v1593 = vadd.f32 %v1581, %v1591
        %v1594 = vlaneseq
        %v1595 = vshrl.u32 %v1594, 7
        %v1596 = vsub.s32 2, %v1595
        %v1597 = vrot.slane %v1570, %v1596
        %v1598 = vlaneseq
        %v1599 = vshrl.u32 %v1598, 7
        %v1600 = vsub.s32 2, %v1599
        %v1601 = vrot.slane %v1571, %v1600
        %v1602 = vmul.f32 %v1597, %v955
        %v1603 = vmul.f32 %v1601, %v955
        %v1604 = vadd.f32 %v1592, %v1602
        %v1605 = vadd.f32 %v1593, %v1603
        %v1606 = vlaneseq
        %v1607 = vshrl.u32 %v1606, 7
        %v1608 = vsub.s32 3, %v1607
        %v1609 = vrot.slane %v1570, %v1608
        %v1610 = vlaneseq
        %v1611 = vshrl.u32 %v1610, 7
        %v1612 = vsub.s32 3, %v1611
        %v1613 = vrot.slane %v1571, %v1612
        %v1614 = vmul.f32 %v1609, %v971
        %v1615 = vmul.f32 %v1613, %v971
        %v1616 = vadd.f32 %v1604, %v1614
        %v1617 = vadd.f32 %v1605, %v1615
        %v1618 = vadd.f32 %v1616, %v979
        %v1619 = vadd.f32 %v1617, %v979
        %v1620 = vmul.f32 %v1618, %v985
        %v1621 = vmul.f32 %v1619, %v985
        %v1624 = vcombine.low %v1620, %v1621
        %v1626 = vadd.f32 %v1270, %v1624
        %v1628 = vcombine.high %v1626, %v1626
        %v1630 = vsel %vm441, %v1626, 0.0
        %v1631 = vrot.slane %v1630, 4
        %v1632 = vadd.f32 %v1630, %v1631
        %v1633 = vrot.slane %v1632, 2
        %v1634 = vadd.f32 %v1632, %v1633
        %v1635 = vrot.slane %v1634, 1
        %v1636 = vadd.f32 %v1634, %v1635
        %v1637 = vsel %vm441, %v1628, 0.0
        %v1638 = vrot.slane %v1637, 4
        %v1639 = vadd.f32 %v1637, %v1638
        %v1640 = vrot.slane %v1639, 2
        %v1641 = vadd.f32 %v1639, %v1640
        %v1642 = vrot.slane %v1641, 1
        %v1643 = vadd.f32 %v1641, %v1642
        %v1644 = vmul.f32 %v1636, %v456
        %v1645 = vmul.f32 %v1643, %v456
        %v1648 = vcombine.low %v1644, %v1645
        %v1650 = vsub.f32 %v1626, %v1648
        %v1651 = vmul.f32 %v1650, %v1650
        %v1653 = vcombine.high %v1651, %v1651
        %v1655 = vsel %vm441, %v1651, 0.0
        %v1656 = vrot.slane %v1655, 4
        %v1657 = vadd.f32 %v1655, %v1656
        %v1658 = vrot.slane %v1657, 2
        %v1659 = vadd.f32 %v1657, %v1658
        %v1660 = vrot.slane %v1659, 1
        %v1661 = vadd.f32 %v1659, %v1660
        %v1662 = vsel %vm441, %v1653, 0.0
        %v1663 = vrot.slane %v1662, 4
        %v1664 = vadd.f32 %v1662, %v1663
        %v1665 = vrot.slane %v1664, 2
        %v1666 = vadd.f32 %v1664, %v1665
        %v1667 = vrot.slane %v1666, 1
        %v1668 = vadd.f32 %v1666, %v1667
        %v1669 = vmul.f32 %v1661, %v456
        %v1670 = vmul.f32 %v1668, %v456
        %v1671 = vadd.f32 %v1669, 1e-06
        %v1672 = vadd.f32 %v1670, 1e-06
        %v1673 = vrsqrt.pop %v1671
        %v1674 = vrsqrt.pop %v1672
        %v1677 = vcombine.low %v1673, %v1674
        %v1679 = vmul.f32 %v1650, %v1677
        %v1680 = vmul.f32 %v1679, %v1056
        %v1681 = vadd.f32 %v1680, %v1068
        %v1683 = vlaneseq
        %v1684 = vshrl.u32 %v1683, 7
        %v1685 = vsub.s32 0, %v1684
        %v1686 = vrot.slane %v1681, %v1685
        %v1687 = vlaneseq
        %v1688 = vshrl.u32 %v1687, 7
        %v1689 = vsub.s32 4, %v1688
        %v1690 = vrot.slane %v1681, %v1689
        %v1693 = vlaneseq
        %v1694 = vshrl.u32 %v1693, 7
        %v1695 = vsub.s32 0, %v1694
        %v1696 = vrot.slane %v1686, %v1695
        %v1697 = vlaneseq
        %v1698 = vshrl.u32 %v1697, 7
        %v1699 = vsub.s32 0, %v1698
        %v1700 = vrot.slane %v1690, %v1699
        %v1701 = vmul.f32 %v1696, %v1093
        %v1702 = vmul.f32 %v1700, %v1093
        %v1703 = vlaneseq
        %v1704 = vshrl.u32 %v1703, 7
        %v1705 = vsub.s32 1, %v1704
        %v1706 = vrot.slane %v1681, %v1705
        %v1707 = vlaneseq
        %v1708 = vshrl.u32 %v1707, 7
        %v1709 = vsub.s32 5, %v1708
        %v1710 = vrot.slane %v1681, %v1709
        %v1713 = vlaneseq
        %v1714 = vshrl.u32 %v1713, 7
        %v1715 = vsub.s32 1, %v1714
        %v1716 = vrot.slane %v1706, %v1715
        %v1717 = vlaneseq
        %v1718 = vshrl.u32 %v1717, 7
        %v1719 = vsub.s32 1, %v1718
        %v1720 = vrot.slane %v1710, %v1719
        %v1721 = vmul.f32 %v1716, %v1117
        %v1722 = vmul.f32 %v1720, %v1117
        %v1723 = vadd.f32 %v1701, %v1721
        %v1724 = vadd.f32 %v1702, %v1722
        %v1725 = vlaneseq
        %v1726 = vshrl.u32 %v1725, 7
        %v1727 = vsub.s32 2, %v1726
        %v1728 = vrot.slane %v1681, %v1727
        %v1729 = vlaneseq
        %v1730 = vshrl.u32 %v1729, 7
        %v1731 = vsub.s32 6, %v1730
        %v1732 = vrot.slane %v1681, %v1731
        %v1735 = vlaneseq
        %v1736 = vshrl.u32 %v1735, 7
        %v1737 = vsub.s32 2, %v1736
        %v1738 = vrot.slane %v1728, %v1737
        %v1739 = vlaneseq
        %v1740 = vshrl.u32 %v1739, 7
        %v1741 = vsub.s32 2, %v1740
        %v1742 = vrot.slane %v1732, %v1741
        %v1743 = vmul.f32 %v1738, %v1143
        %v1744 = vmul.f32 %v1742, %v1143
        %v1745 = vadd.f32 %v1723, %v1743
        %v1746 = vadd.f32 %v1724, %v1744
        %v1747 = vlaneseq
        %v1748 = vshrl.u32 %v1747, 7
        %v1749 = vsub.s32 3, %v1748
        %v1750 = vrot.slane %v1681, %v1749
        %v1751 = vlaneseq
        %v1752 = vshrl.u32 %v1751, 7
        %v1753 = vsub.s32 7, %v1752
        %v1754 = vrot.slane %v1681, %v1753
        %v1757 = vlaneseq
        %v1758 = vshrl.u32 %v1757, 7
        %v1759 = vsub.s32 3, %v1758
        %v1760 = vrot.slane %v1750, %v1759
        %v1761 = vlaneseq
        %v1762 = vshrl.u32 %v1761, 7
        %v1763 = vsub.s32 3, %v1762
        %v1764 = vrot.slane %v1754, %v1763
        %v1765 = vmul.f32 %v1760, %v1169
        %v1766 = vmul.f32 %v1764, %v1169
        %v1767 = vadd.f32 %v1745, %v1765
        %v1768 = vadd.f32 %v1746, %v1766
        %v1769 = vadd.f32 %v1767, %v1177
        %v1770 = vadd.f32 %v1768, %v1177
        %v1773 = vrot.slane %v1769, 4
        %v1774 = vrot.slane %v1770, 4
        %v1777 = vmul.f32 %v1769, %v1773
        %v1778 = vmul.f32 %v1770, %v1774
        %v1779 = vlaneseq
        %v1780 = vshrl.u32 %v1779, 7
        %v1781 = vsub.s32 0, %v1780
        %v1782 = vrot.slane %v1777, %v1781
        %v1783 = vlaneseq
        %v1784 = vshrl.u32 %v1783, 7
        %v1785 = vsub.s32 0, %v1784
        %v1786 = vrot.slane %v1778, %v1785
        %v1787 = vmul.f32 %v1782, %v1200
        %v1788 = vmul.f32 %v1786, %v1200
        %v1789 = vlaneseq
        %v1790 = vshrl.u32 %v1789, 7
        %v1791 = vsub.s32 1, %v1790
        %v1792 = vrot.slane %v1777, %v1791
        %v1793 = vlaneseq
        %v1794 = vshrl.u32 %v1793, 7
        %v1795 = vsub.s32 1, %v1794
        %v1796 = vrot.slane %v1778, %v1795
        %v1797 = vmul.f32 %v1792, %v1214
        %v1798 = vmul.f32 %v1796, %v1214
        %v1799 = vadd.f32 %v1787, %v1797
        %v1800 = vadd.f32 %v1788, %v1798
        %v1801 = vlaneseq
        %v1802 = vshrl.u32 %v1801, 7
        %v1803 = vsub.s32 2, %v1802
        %v1804 = vrot.slane %v1777, %v1803
        %v1805 = vlaneseq
        %v1806 = vshrl.u32 %v1805, 7
        %v1807 = vsub.s32 2, %v1806
        %v1808 = vrot.slane %v1778, %v1807
        %v1809 = vmul.f32 %v1804, %v1230
        %v1810 = vmul.f32 %v1808, %v1230
        %v1811 = vadd.f32 %v1799, %v1809
        %v1812 = vadd.f32 %v1800, %v1810
        %v1813 = vlaneseq
        %v1814 = vshrl.u32 %v1813, 7
        %v1815 = vsub.s32 3, %v1814
        %v1816 = vrot.slane %v1777, %v1815
        %v1817 = vlaneseq
        %v1818 = vshrl.u32 %v1817, 7
        %v1819 = vsub.s32 3, %v1818
        %v1820 = vrot.slane %v1778, %v1819
        %v1821 = vmul.f32 %v1816, %v1246
        %v1822 = vmul.f32 %v1820, %v1246
        %v1823 = vadd.f32 %v1811, %v1821
        %v1824 = vadd.f32 %v1812, %v1822
        %v1825 = vadd.f32 %v1823, %v1254
        %v1826 = vadd.f32 %v1824, %v1254
        %v1827 = vmul.f32 %v1825, %v1260
        %v1828 = vmul.f32 %v1826, %v1260
        %v1831 = vcombine.low %v1827, %v1828
        %v1833 = vadd.f32 %v1626, %v1831
        %1834 = vst [vmem:[%s418] sm:$0xff] %v1833
        %s1835 = sand.u32 %s258, 1
        %s1836 = scalar_lea.sflag [#allocation4], %s1835
        %s1837 = sand.u32 %s258, 1
        %s1838 = smul.addr %s1837, 8
        %s1839 = scalar_lea.vmem [#allocation5], %s1838
        %s1840 = sand.u32 %s284, 1
        %s1841 = scalar_lea.sflag [#allocation7], %s1840
        %s1842 = sand.u32 %s284, 1
        %s1843 = smul.addr %s1842, 8
        %s1844 = scalar_lea.vmem [#allocation6], %s1843
        // Predicated region
        $region65: #{tpu_custom_call.1} parent=59 // pred_check
          %p1845 = pneg %p268
        $region66: #{tpu_custom_call.1} parent=59 // pred_check_branch
          %1847 = sbr.rel (%p1845) target = $region68
        $region67: #{tpu_custom_call.1} parent=59 // pred_region
          %s1849 = ssub.s32 128, 128
          %1850 = vsyncadd %s1836, %s1849
          %s1851 = smul.addr %s30, 2
          %s1852 = smul.addr %s1851, 64
          %s1853 = scalar_lea.hbm %s10, %s1852
          %s1855 = sshll.u32 %s1839, 4
          %s1856 = int_to_ptr.vmem [resolvable:$true] %s1855
          %1858 = dma.vmem_to_hbm [thread:$0]  %s1856, 128, %s1853, %s1836
        $region68: #{tpu_custom_call.1} parent=59 // pred_fallthru
          _
        // Predicated region
        $region69: #{tpu_custom_call.1} parent=59 // pred_check
          %p1859 = pneg %p294
        $region70: #{tpu_custom_call.1} parent=59 // pred_check_branch
          %1861 = sbr.rel (%p1859) target = $region72
        $region71: #{tpu_custom_call.1} parent=59 // pred_region
          %s1863 = ssub.s32 128, 128
          %1864 = vsyncadd %s1841, %s1863
          %s1865 = smul.addr %s30, 2
          %s1866 = smul.addr %s1865, 64
          %s1867 = scalar_lea.hbm %s11, %s1866
          %s1869 = sshll.u32 %s1844, 4
          %s1870 = int_to_ptr.vmem [resolvable:$true] %s1869
          %1872 = dma.vmem_to_hbm [thread:$0]  %s1870, 128, %s1867, %s1841
        $region72: #{tpu_custom_call.1} parent=59 // pred_fallthru
          _
      $region60: #{tpu_custom_call.1} parent=5 // pred_fallthru
        _
      %p1873 = scmp.le.s32.totalorder 2, %s25
      // Predicated region
      $region73: #{tpu_custom_call.1} parent=5 // pred_check
        %p1874 = pneg %p1873
      $region74: #{tpu_custom_call.1} parent=5 // pred_check_branch
        %1876 = sbr.rel (%p1874) target = $region76
      $region75: #{tpu_custom_call.1} parent=5 // pred_region
        %s1877 = ssub.s32 %s25, 2
        // Predicated region
        $region77: #{tpu_custom_call.1} parent=75 // pred_check
          %p1878 = pneg %p274
        $region78: #{tpu_custom_call.1} parent=75 // pred_check_branch
          %1880 = sbr.rel (%p1878) target = $region80
        $region79: #{tpu_custom_call.1} parent=75 // pred_region
          %s1881 = sand.u32 %s259, 1
          %s1882 = scalar_lea.sflag [#allocation4], %s1881
          %s1883 = sand.u32 %s259, 1
          %s1884 = smul.addr %s1883, 8
          %s1885 = scalar_lea.vmem [#allocation5], %s1884
          %1886 = dma.done %s1882, 128
        $region80: #{tpu_custom_call.1} parent=75 // pred_fallthru
          _
        // Predicated region
        $region81: #{tpu_custom_call.1} parent=75 // pred_check
          %p1887 = pneg %p300
        $region82: #{tpu_custom_call.1} parent=75 // pred_check_branch
          %1889 = sbr.rel (%p1887) target = $region84
        $region83: #{tpu_custom_call.1} parent=75 // pred_region
          %s1890 = sand.u32 %s285, 1
          %s1891 = scalar_lea.sflag [#allocation7], %s1890
          %s1892 = sand.u32 %s285, 1
          %s1893 = smul.addr %s1892, 8
          %s1894 = scalar_lea.vmem [#allocation6], %s1893
          %1895 = dma.done %s1891, 128
        $region84: #{tpu_custom_call.1} parent=75 // pred_fallthru
          _
      $region76: #{tpu_custom_call.1} parent=5 // pred_fallthru
        _
    $region6: #{tpu_custom_call.1} parent=1 // loop_footer
      %s29 = sadd.s32 1, %s25
    $region7: #{tpu_custom_call.1} parent=1 // loop_footer_branch
      %24 = sbr.rel target = $region3
    $region8: #{tpu_custom_call.1} parent=1 // loop_exit
      _
    %1896 = vsyncpa [#allocation3], 1
    %s1897 = scalar_lea.sflag [#allocation3], 1
    %1898 = vsyncpa %s1897, 1
    %1899 = vsyncpa [#allocation4], 1
    %s1900 = scalar_lea.sflag [#allocation4], 1
    %1901 = vsyncpa %s1900, 1
    %1902 = vsyncpa [#allocation7], 1
    %s1903 = scalar_lea.sflag [#allocation7], 1
    %1904 = vsyncpa %s1903, 1

</llo_original>
